<compile_context>
chip_gen: v7x
topology: tpu7x:2x2x1
jax: 0.10.0
libtpu: 0.0.40
codegen_flags: <defaults>
</compile_context>

<pallas_src>
import functools

import jax
import jax.numpy as jnp
from jax import lax
from jax.experimental import pallas as pl
from jax.experimental.pallas import tpu as pltpu

HEAD_HIDDEN = 100   # hard-coded in MultiHeadAttention.__init__ -> forces N == 100
HEAD_PAD = 128      # per-head lane-aligned width (also the padded N for adj)
OUT_PAD = 128       # lane-dense output slab width


def mgat_kernel(h_ref, adj_ref, w_ref, b_ref, fcw_ref, fcb_ref, out_ref,
                *, num_heads, head_pad):
    # h_ref   : (1, N, D)            f32
    # adj_ref : (1, 128, 128)        f32, zero-padded beyond (N, N)
    # w_ref   : (D, H*128)           f32, head k in cols [k*128, k*128+100), rest 0
    # b_ref   : (1, H*128)           f32, same padding
    # fcw_ref : (D, 128)             f32, cols >= D are 0
    # fcb_ref : (1, 128)             f32, cols >= D are 0
    # out_ref : (1, N, 128)          f32 lane-dense output slab
    h = h_ref[0]                     # (N, D)
    adj = adj_ref[0]                 # (128, 128)
    n, _ = h.shape

    # "A @ B.T" without the transpose: contract the last dim of both operands
    # directly on the MXU (no XLU transposes).
    contract_last = (((1,), (1,)), ((), ()))

    # Accumulate softmax probabilities across heads; since h is shared,
    # mean_k(softmax(alpha_k) @ h) == (sum_k softmax(alpha_k)) @ h / H,
    # so only ONE (N,N)x(N,D) aggregation matmul is issued after the loop.
    p_sum = jnp.zeros((n, n), dtype=jnp.float32)

    for k in range(num_heads):       # small static head loop, unrolled
        # Per-head projection inside the loop: identical FLOPs to a fused
        # projection but only one head's (N,128) activation stays live
        # (no vreg spills).  Static lane-aligned ref slices are free; padded
        # weight/bias cols [100,128) are exactly zero, so wh cols are too.
        wk = w_ref[:, k * head_pad:(k + 1) * head_pad]               # (D, 128)
        bk = b_ref[:, k * head_pad:(k + 1) * head_pad]               # (1, 128)
        wh = jnp.dot(h, wk, preferred_element_type=jnp.float32) + bk  # (N, 128)

        # t = W_h @ adj^T   (padded terms contribute exact zeros)
        t = lax.dot_general(wh, adj, contract_last,
                            preferred_element_type=jnp.float32)      # (N, 128)
        # alpha = t @ W_h^T
        alpha = lax.dot_general(t, wh, contract_last,
                                preferred_element_type=jnp.float32)  # (N, N)

        # softmax over the last (unpadded, size-N) axis
        m = jnp.max(alpha, axis=-1, keepdims=True)
        e = jnp.exp(alpha - m)
        p_sum = p_sum + e * pl.reciprocal(
            jnp.sum(e, axis=-1, keepdims=True), approx=True)

    out = jnp.dot(p_sum, h, preferred_element_type=jnp.float32) * (1.0 / num_heads)
    out = jnp.dot(out, fcw_ref[...],
                  preferred_element_type=jnp.float32) + fcb_ref[...]   # (N, 128)
    out_ref[0] = jnp.maximum(out, 0.0).astype(out_ref.dtype)           # ReLU


def pack_mgat_params(w, b, fcw, fcb, *, num_heads):
    """One-time, parameter-only packing — call at init, NOT per forward.

    w   : (H, D, 100) per-head Linear weights, stored (in, out)
    b   : (H, 1, 100) per-head biases
    fcw : (D, D)      final fc weight, stored (in, out)
    fcb : (1, D)      final fc bias
    """
    H = num_heads
    D = w.shape[1]
    # Per-head weights packed into one lane-aligned (D, H*128) slab.
    w_all = jnp.zeros((D, H * HEAD_PAD), jnp.float32)
    b_all = jnp.zeros((1, H * HEAD_PAD), jnp.float32)
    for k in range(H):
        w_all = w_all.at[:, k * HEAD_PAD:k * HEAD_PAD + HEAD_HIDDEN].set(w[k])
        b_all = b_all.at[:, k * HEAD_PAD:k * HEAD_PAD + HEAD_HIDDEN].set(b[k])
    # Lane-dense output: fc padded to 128 output columns (ReLU of zero pad is 0).
    fcw_p = jnp.zeros((D, OUT_PAD), jnp.float32).at[:, :D].set(fcw)
    fcb_p = jnp.zeros((1, OUT_PAD), jnp.float32).at[:, :D].set(fcb)
    return w_all, b_all, fcw_p, fcb_p


def mgat_forward(h, adj, w_all, b_all, fcw_p, fcb_p, *, num_heads):
    """Forward pass; wrap in jax.jit (with num_heads bound) so the adj pad and
    the output slice fuse around the pallas_call."""
    B, N, D = h.shape
    H = num_heads
    HP = HEAD_PAD
    assert N == HEAD_HIDDEN, "module's hard-coded hidden=100 forces N == 100"
    assert D <= OUT_PAD

    # Zero-pad adjacency to (128, 128); padded rows/cols contribute exact
    # zeros in the no-transpose dot_generals (fuses under jit).
    adj_p = jnp.zeros((B, HP, HP), jnp.float32).at[:, :N, :N].set(adj)

    kernel = functools.partial(mgat_kernel, num_heads=H, head_pad=HP)

    # Constant index maps: weight operands are block-resident across the batch
    # grid (no re-DMA per step).
    def weight_spec(shape):
        return pl.BlockSpec(shape, lambda i: (0, 0))

    out_p = pl.pallas_call(
        kernel,
        out_shape=jax.ShapeDtypeStruct((B, N, OUT_PAD), jnp.float32),
        grid_spec=pltpu.PrefetchScalarGridSpec(
            num_scalar_prefetch=0,
            grid=(B,),
            in_specs=[
                pl.BlockSpec((1, N, D), lambda i: (i, 0, 0)),
                pl.BlockSpec((1, HP, HP), lambda i: (i, 0, 0)),
                weight_spec((D, H * HP)),
                weight_spec((1, H * HP)),
                weight_spec((D, OUT_PAD)),
                weight_spec((1, OUT_PAD)),
            ],
            out_specs=pl.BlockSpec((1, N, OUT_PAD), lambda i: (i, 0, 0)),
        ),
        compiler_params=pltpu.CompilerParams(
            dimension_semantics=("parallel",)),
    )(h, adj_p, w_all, b_all, fcw_p, fcb_p)
    return out_p[..., :D]


def mgat_reference(h, adj, w, b, fcw, fcb, *, num_heads):
    """Plain-JAX reference mirroring the PyTorch forward."""
    outs = []
    for k in range(num_heads):
        wh = jnp.einsum('bnd,dh->bnh', h, w[k]) + b[k]                    # (B, N, 100)
        alpha = jnp.matmul(jnp.matmul(wh, adj.transpose(0, 2, 1)),
                           wh.transpose(0, 2, 1))                          # (B, N, N)
        alpha = jax.nn.softmax(alpha, axis=-1)
        outs.append(jnp.matmul(alpha, h))
    out = jnp.mean(jnp.stack(outs, axis=1), axis=1)
    out = jnp.matmul(out, fcw) + fcb[0]
    return jax.nn.relu(out)


if __name__ == "__main__":
    B = 2
    N = HEAD_HIDDEN          # 100, forced by the module's hard-coded hidden size
    D = 32                   # input_dim == output_dim (required by the fc matmul)
    num_heads = 2

    key = jax.random.PRNGKey(0)
    k_h, k_adj, k_w, k_b, k_fw, k_fb = jax.random.split(key, 6)

    h = jax.random.normal(k_h, (B, N, D), dtype=jnp.float32) * 0.1
    adj = jax.random.uniform(k_adj, (B, N, N), dtype=jnp.float32)

    # Deterministic synthetic parameters (Linear weights stored as (in, out)).
    w = jax.random.normal(k_w, (num_heads, D, HEAD_HIDDEN), dtype=jnp.float32) * 0.05
    b = jax.random.normal(k_b, (num_heads, 1, HEAD_HIDDEN), dtype=jnp.float32) * 0.05
    fcw = jax.random.normal(k_fw, (D, D), dtype=jnp.float32) * 0.05
    fcb = jax.random.normal(k_fb, (1, D), dtype=jnp.float32) * 0.05

    # One-time parameter packing (hoisted out of the forward hot path).
    w_all, b_all, fcw_p, fcb_p = pack_mgat_params(
        w, b, fcw, fcb, num_heads=num_heads)

    # jit the forward so the adj zero-pad and trailing [..., :D] slice fuse.
    fwd = jax.jit(functools.partial(mgat_forward, num_heads=num_heads))
    out = jax.block_until_ready(fwd(h, adj, w_all, b_all, fcw_p, fcb_p))

    ref = mgat_reference(h, adj, w, b, fcw, fcb, num_heads=num_heads)
    assert out.shape == (B, N, D)
    # Tolerance slightly relaxed vs 1e-4 to cover the approx (EUP) reciprocal
    # in the softmax normalization; structural errors would be >> 1e-3.
    assert jnp.allclose(out, ref, atol=1e-3, rtol=1e-3), "mismatch vs reference"

    print("KERNEL_OK")
</pallas_src>

<mosaic_0001>
module attributes {stable_mosaic.version = 11 : i64} {
  func.func @mgat_kernel(%arg0: i32, %arg1: memref<1x100x32xf32, #tpu.memory_space<vmem>>, %arg2: memref<1x128x128xf32, #tpu.memory_space<vmem>>, %arg3: memref<32x256xf32, #tpu.memory_space<vmem>>, %arg4: memref<1x256xf32, #tpu.memory_space<vmem>>, %arg5: memref<32x128xf32, #tpu.memory_space<vmem>>, %arg6: memref<1x128xf32, #tpu.memory_space<vmem>>, %arg7: memref<1x100x128xf32, #tpu.memory_space<vmem>>) attributes {dimension_semantics = [#tpu.dimension_semantics<parallel>], iteration_bounds = array<i64: 2>, scalar_prefetch = 0 : i64, scratch_operands = 0 : i64, tpu.core_type = #tpu.core_type<tc>, window_params = [{transform_indices = @transform_0, window_bounds = array<i64: 1, 100, 32>}, {transform_indices = @transform_1, window_bounds = array<i64: 1, 128, 128>}, {pipeline_mode = #tpu.pipeline_mode<synchronous>, transform_indices = @transform_2, window_bounds = array<i64: 32, 256>}, {pipeline_mode = #tpu.pipeline_mode<synchronous>, transform_indices = @transform_3, window_bounds = array<i64: 1, 256>}, {pipeline_mode = #tpu.pipeline_mode<synchronous>, transform_indices = @transform_4, window_bounds = array<i64: 32, 128>}, {pipeline_mode = #tpu.pipeline_mode<synchronous>, transform_indices = @transform_5, window_bounds = array<i64: 1, 128>}, {transform_indices = @transform_6, window_bounds = array<i64: 1, 100, 128>}]} {
    %c0 = arith.constant 0 : index
    %c0_0 = arith.constant 0 : index
    %c0_1 = arith.constant 0 : index
    %0 = vector.load %arg1[%c0, %c0_0, %c0_1] : memref<1x100x32xf32, #tpu.memory_space<vmem>>, vector<1x100x32xf32>
    %1 = vector.shape_cast %0 : vector<1x100x32xf32> to vector<100x32xf32>
    %c0_2 = arith.constant 0 : index
    %c0_3 = arith.constant 0 : index
    %c0_4 = arith.constant 0 : index
    %2 = vector.load %arg2[%c0_2, %c0_3, %c0_4] : memref<1x128x128xf32, #tpu.memory_space<vmem>>, vector<1x128x128xf32>
    %3 = vector.shape_cast %2 : vector<1x128x128xf32> to vector<128x128xf32>
    %cst = arith.constant 0.000000e+00 : f32
    %4 = vector.broadcast %cst : f32 to vector<100x100xf32>
    %c0_5 = arith.constant 0 : index
    %c0_6 = arith.constant 0 : index
    %5 = vector.load %arg3[%c0_5, %c0_6] : memref<32x256xf32, #tpu.memory_space<vmem>>, vector<32x128xf32>
    %c0_7 = arith.constant 0 : index
    %c0_8 = arith.constant 0 : index
    %6 = vector.load %arg4[%c0_7, %c0_8] : memref<1x256xf32, #tpu.memory_space<vmem>>, vector<1x128xf32>
    %cst_9 = arith.constant dense<0.000000e+00> : vector<100x128xf32>
    %7 = tpu.matmul %1, %5, %cst_9 {dimension_numbers = #tpu.dot_dimension_numbers<[1], [0], [0], [1], [0, 0, 1, 1], [], []>} : vector<100x32xf32>, vector<32x128xf32>, vector<100x128xf32> -> vector<100x128xf32>
    %8 = vector.broadcast %6 : vector<1x128xf32> to vector<100x128xf32>
    %9 = arith.addf %7, %8 : vector<100x128xf32>
    %cst_10 = arith.constant dense<0.000000e+00> : vector<100x128xf32>
    %10 = tpu.matmul %9, %3, %cst_10 {dimension_numbers = #tpu.dot_dimension_numbers<[1], [1], [0], [0], [0, 0, 1, 0], [], []>} : vector<100x128xf32>, vector<128x128xf32>, vector<100x128xf32> -> vector<100x128xf32>
    %cst_11 = arith.constant dense<0.000000e+00> : vector<100x100xf32>
    %11 = tpu.matmul %10, %9, %cst_11 {dimension_numbers = #tpu.dot_dimension_numbers<[1], [1], [0], [0], [0, 0, 1, 0], [], []>} : vector<100x128xf32>, vector<100x128xf32>, vector<100x100xf32> -> vector<100x100xf32>
    %cst_12 = arith.constant dense<0xFF800000> : vector<100xf32>
    %12 = vector.multi_reduction <maximumf>, %11, %cst_12 [1] : vector<100x100xf32> to vector<100xf32>
    %13 = vector.shape_cast %12 : vector<100xf32> to vector<100x1xf32>
    %14 = vector.broadcast %13 : vector<100x1xf32> to vector<100x100xf32>
    %15 = arith.subf %11, %14 : vector<100x100xf32>
    %16 = math.exp %15 : vector<100x100xf32>
    %cst_13 = arith.constant dense<0.000000e+00> : vector<100xf32>
    %17 = vector.multi_reduction <add>, %16, %cst_13 [1] : vector<100x100xf32> to vector<100xf32>
    %18 = vector.shape_cast %17 : vector<100xf32> to vector<100x1xf32>
    %19 = tpu.reciprocal %18 {approx = true} : vector<100x1xf32> -> vector<100x1xf32>
    %20 = vector.broadcast %19 : vector<100x1xf32> to vector<100x100xf32>
    %21 = arith.mulf %16, %20 : vector<100x100xf32>
    %22 = arith.addf %4, %21 : vector<100x100xf32>
    %c0_14 = arith.constant 0 : index
    %c128 = arith.constant 128 : index
    %23 = vector.load %arg3[%c0_14, %c128] : memref<32x256xf32, #tpu.memory_space<vmem>>, vector<32x128xf32>
    %c0_15 = arith.constant 0 : index
    %c128_16 = arith.constant 128 : index
    %24 = vector.load %arg4[%c0_15, %c128_16] : memref<1x256xf32, #tpu.memory_space<vmem>>, vector<1x128xf32>
    %cst_17 = arith.constant dense<0.000000e+00> : vector<100x128xf32>
    %25 = tpu.matmul %1, %23, %cst_17 {dimension_numbers = #tpu.dot_dimension_numbers<[1], [0], [0], [1], [0, 0, 1, 1], [], []>} : vector<100x32xf32>, vector<32x128xf32>, vector<100x128xf32> -> vector<100x128xf32>
    %26 = vector.broadcast %24 : vector<1x128xf32> to vector<100x128xf32>
    %27 = arith.addf %25, %26 : vector<100x128xf32>
    %cst_18 = arith.constant dense<0.000000e+00> : vector<100x128xf32>
    %28 = tpu.matmul %27, %3, %cst_18 {dimension_numbers = #tpu.dot_dimension_numbers<[1], [1], [0], [0], [0, 0, 1, 0], [], []>} : vector<100x128xf32>, vector<128x128xf32>, vector<100x128xf32> -> vector<100x128xf32>
    %cst_19 = arith.constant dense<0.000000e+00> : vector<100x100xf32>
    %29 = tpu.matmul %28, %27, %cst_19 {dimension_numbers = #tpu.dot_dimension_numbers<[1], [1], [0], [0], [0, 0, 1, 0], [], []>} : vector<100x128xf32>, vector<100x128xf32>, vector<100x100xf32> -> vector<100x100xf32>
    %cst_20 = arith.constant dense<0xFF800000> : vector<100xf32>
    %30 = vector.multi_reduction <maximumf>, %29, %cst_20 [1] : vector<100x100xf32> to vector<100xf32>
    %31 = vector.shape_cast %30 : vector<100xf32> to vector<100x1xf32>
    %32 = vector.broadcast %31 : vector<100x1xf32> to vector<100x100xf32>
    %33 = arith.subf %29, %32 : vector<100x100xf32>
    %34 = math.exp %33 : vector<100x100xf32>
    %cst_21 = arith.constant dense<0.000000e+00> : vector<100xf32>
    %35 = vector.multi_reduction <add>, %34, %cst_21 [1] : vector<100x100xf32> to vector<100xf32>
    %36 = vector.shape_cast %35 : vector<100xf32> to vector<100x1xf32>
    %37 = tpu.reciprocal %36 {approx = true} : vector<100x1xf32> -> vector<100x1xf32>
    %38 = vector.broadcast %37 : vector<100x1xf32> to vector<100x100xf32>
    %39 = arith.mulf %34, %38 : vector<100x100xf32>
    %40 = arith.addf %22, %39 : vector<100x100xf32>
    %cst_22 = arith.constant dense<0.000000e+00> : vector<100x32xf32>
    %41 = tpu.matmul %40, %1, %cst_22 {dimension_numbers = #tpu.dot_dimension_numbers<[1], [0], [0], [1], [0, 0, 1, 1], [], []>} : vector<100x100xf32>, vector<100x32xf32>, vector<100x32xf32> -> vector<100x32xf32>
    %cst_23 = arith.constant 5.000000e-01 : f32
    %42 = vector.broadcast %cst_23 : f32 to vector<100x32xf32>
    %43 = arith.mulf %41, %42 : vector<100x32xf32>
    %c0_24 = arith.constant 0 : index
    %c0_25 = arith.constant 0 : index
    %44 = vector.load %arg5[%c0_24, %c0_25] : memref<32x128xf32, #tpu.memory_space<vmem>>, vector<32x128xf32>
    %cst_26 = arith.constant dense<0.000000e+00> : vector<100x128xf32>
    %45 = tpu.matmul %43, %44, %cst_26 {dimension_numbers = #tpu.dot_dimension_numbers<[1], [0], [0], [1], [0, 0, 1, 1], [], []>} : vector<100x32xf32>, vector<32x128xf32>, vector<100x128xf32> -> vector<100x128xf32>
    %c0_27 = arith.constant 0 : index
    %c0_28 = arith.constant 0 : index
    %46 = vector.load %arg6[%c0_27, %c0_28] : memref<1x128xf32, #tpu.memory_space<vmem>>, vector<1x128xf32>
    %47 = vector.broadcast %46 : vector<1x128xf32> to vector<100x128xf32>
    %48 = arith.addf %45, %47 : vector<100x128xf32>
    %cst_29 = arith.constant 0.000000e+00 : f32
    %49 = vector.broadcast %cst_29 : f32 to vector<100x128xf32>
    %50 = arith.maximumf %48, %49 : vector<100x128xf32>
    %c0_30 = arith.constant 0 : index
    %c0_31 = arith.constant 0 : index
    %c0_32 = arith.constant 0 : index
    %51 = vector.load %arg7[%c0_30, %c0_31, %c0_32] : memref<1x100x128xf32, #tpu.memory_space<vmem>>, vector<1x100x128xf32>
    %52 = vector.shape_cast %51 : vector<1x100x128xf32> to vector<100x128xf32>
    %53 = vector.shape_cast %50 : vector<100x128xf32> to vector<1x100x128xf32>
    tpu.vector_store %arg7[%c0_30, %c0_31, %c0_32], %53 {strides = array<i32>} : memref<1x100x128xf32, #tpu.memory_space<vmem>>, vector<1x100x128xf32>,
    return
  }
  func.func @transform_0(%arg0: i32) -> (i32, i32, i32) {
    %c0_i32 = arith.constant 0 : i32
    %c0_i32_0 = arith.constant 0 : i32
    %c0_i32_1 = arith.constant 0 : i32
    return %arg0, %c0_i32, %c0_i32_0 : i32, i32, i32
  }
  func.func @transform_1(%arg0: i32) -> (i32, i32, i32) {
    %c0_i32 = arith.constant 0 : i32
    %c0_i32_0 = arith.constant 0 : i32
    %c0_i32_1 = arith.constant 0 : i32
    return %arg0, %c0_i32, %c0_i32_0 : i32, i32, i32
  }
  func.func @transform_2(%arg0: i32) -> (i32, i32) {
    %c0_i32 = arith.constant 0 : i32
    %c0_i32_0 = arith.constant 0 : i32
    %c0_i32_1 = arith.constant 0 : i32
    return %c0_i32, %c0_i32_0 : i32, i32
  }
  func.func @transform_3(%arg0: i32) -> (i32, i32) {
    %c0_i32 = arith.constant 0 : i32
    %c0_i32_0 = arith.constant 0 : i32
    %c0_i32_1 = arith.constant 0 : i32
    return %c0_i32, %c0_i32_0 : i32, i32
  }
  func.func @transform_4(%arg0: i32) -> (i32, i32) {
    %c0_i32 = arith.constant 0 : i32
    %c0_i32_0 = arith.constant 0 : i32
    %c0_i32_1 = arith.constant 0 : i32
    return %c0_i32, %c0_i32_0 : i32, i32
  }
  func.func @transform_5(%arg0: i32) -> (i32, i32) {
    %c0_i32 = arith.constant 0 : i32
    %c0_i32_0 = arith.constant 0 : i32
    %c0_i32_1 = arith.constant 0 : i32
    return %c0_i32, %c0_i32_0 : i32, i32
  }
  func.func @transform_6(%arg0: i32) -> (i32, i32, i32) {
    %c0_i32 = arith.constant 0 : i32
    %c0_i32_0 = arith.constant 0 : i32
    %c0_i32_1 = arith.constant 0 : i32
    return %arg0, %c0_i32, %c0_i32_0 : i32, i32, i32
  }
}

</mosaic_0001>

<llo_original>
// kernel: mgat_forward.1
$region0: #{mgat_forward.1}
  #allocation0 [shape = 'u32[]', space=smem, size = 0x4, offset = 0x4, fixed_abs, tag = 'smem constant byte address 0x4 - core index']
  #allocation1 [shape = 'u32[144,128]{1,0:T(1,128)}', space=vmem, size = 0x12000, scoped, tag = 'internal scratch']
  %s0 = inlined_call_operand.vmem [shape: f32[2,100,32], index: 0, kind: input, shape index: {}]
  %s1 = inlined_call_operand.vmem [shape: f32[2,128,128], index: 1, kind: input, shape index: {}]
  %s2 = inlined_call_operand.vmem [shape: f32[32,256], index: 2, kind: input, shape index: {}]
  %s3 = inlined_call_operand.vmem [shape: f32[1,256], index: 3, kind: input, shape index: {}]
  %s4 = inlined_call_operand.vmem [shape: f32[32,128], index: 4, kind: input, shape index: {}]
  %s5 = inlined_call_operand.vmem [shape: f32[1,128], index: 5, kind: input, shape index: {}]
  %s6 = inlined_call_operand.vmem [shape: f32[2,100,128], index: 6, kind: output, shape index: {}]
  %s7 = sld [smem:[#allocation0]]
  $region57: #{mgat_forward.1} parent=0
    _
  %s9 = ssub.s32 1, %s7
  %s10 = scalar_select 0, %s9, %s7
  loop: start=0, step=1, limit=4
  $region2: #{mgat_forward.1} parent=0 // loop_pre_header
    _
  $region3: #{mgat_forward.1} parent=0 // loop_header
    %s12 = sphi 0, %s16
    %p13 = scmp.ge.s32.totalorder %s12, 4
    %s22 = sphi 0, %s24
    %s25 = sphi 0, %s22
    %s26 = sphi 0, %s25
    %s42 = sphi 0, %s26
    %s48 = sphi 0, %s50
    %s51 = sphi 0, %s48
    %s52 = sphi 0, %s51
    %s68 = sphi 0, %s52
    %s72 = sphi 0, %s72
    %s74 = sphi 0, %s72
    %s75 = sphi 0, %s74
    %s89 = sphi 0, %s75
    %s93 = sphi 0, %s93
    %s95 = sphi 0, %s93
    %s96 = sphi 0, %s95
    %s110 = sphi 0, %s96
    %s114 = sphi 0, %s114
    %s116 = sphi 0, %s114
    %s117 = sphi 0, %s116
    %s131 = sphi 0, %s117
    %s135 = sphi 0, %s135
    %s137 = sphi 0, %s135
    %s138 = sphi 0, %s137
    %s152 = sphi 0, %s138
    %s158 = sphi 0, %s160
    %s161 = sphi 0, %s158
    %s162 = sphi 0, %s161
    %s178 = sphi 0, %s162
  $region4: #{mgat_forward.1} parent=0 // loop_header_branch
    %15 = sbr.rel (%p13) target = $region8
  $region5: #{mgat_forward.1} parent=0 // loop_body
    %s17 = ssub.s32 %s12, 1
    %s18 = ssub.s32 %s12, 2
    %s19 = sadd.s32 %s12, 1
    %s20 = ssub.s32 %s12, %s19
    %p21 = scmp.eq.s32.totalorder %s20, 0
    %s23 = sadd.s32 %s22, 1
    %s24 = scalar_select %p21, %s22, %s23
    %p27 = pneg %p21
    %p28 = scmp.eq.s32.totalorder %s12, 1
    %p29 = por %p27, %p28
    %p30 = scmp.ne.s32.totalorder %s22, %s25
    %p31 = scmp.eq.s32.totalorder %s12, 0
    %p32 = por %p30, %p31
    %p33 = scmp.ne.s32.totalorder %s22, %s25
    %p34 = scmp.eq.s32.totalorder %s17, 1
    %p35 = por %p33, %p34
    %p36 = scmp.ne.s32.totalorder %s25, %s26
    %p37 = scmp.eq.s32.totalorder %s17, 0
    %p38 = por %p36, %p37
    %p39 = scmp.ne.s32.totalorder %s25, %s26
    %p40 = scmp.eq.s32.totalorder %s18, 1
    %p41 = por %p39, %p40
    %p43 = scmp.ne.s32.totalorder %s26, %s42
    %p44 = scmp.eq.s32.totalorder %s18, 0
    %p45 = por %p43, %p44
    %s46 = ssub.s32 %s12, %s19
    %p47 = scmp.eq.s32.totalorder %s46, 0
    %s49 = sadd.s32 %s48, 1
    %s50 = scalar_select %p47, %s48, %s49
    %p53 = pneg %p47
    %p54 = scmp.eq.s32.totalorder %s12, 1
    %p55 = por %p53, %p54
    %p56 = scmp.ne.s32.totalorder %s48, %s51
    %p57 = scmp.eq.s32.totalorder %s12, 0
    %p58 = por %p56, %p57
    %p59 = scmp.ne.s32.totalorder %s48, %s51
    %p60 = scmp.eq.s32.totalorder %s17, 1
    %p61 = por %p59, %p60
    %p62 = scmp.ne.s32.totalorder %s51, %s52
    %p63 = scmp.eq.s32.totalorder %s17, 0
    %p64 = por %p62, %p63
    %p65 = scmp.ne.s32.totalorder %s51, %s52
    %p66 = scmp.eq.s32.totalorder %s18, 1
    %p67 = por %p65, %p66
    %p69 = scmp.ne.s32.totalorder %s52, %s68
    %p70 = scmp.eq.s32.totalorder %s18, 0
    %p71 = por %p69, %p70
    %s73 = sadd.s32 %s72, 1
    %p76 = scmp.eq.s32.totalorder %s12, 1
    %p77 = scmp.ne.s32.totalorder %s72, %s74
    %p78 = scmp.eq.s32.totalorder %s12, 0
    %p79 = por %p77, %p78
    %p80 = scmp.ne.s32.totalorder %s72, %s74
    %p81 = scmp.eq.s32.totalorder %s17, 1
    %p82 = por %p80, %p81
    %p83 = scmp.ne.s32.totalorder %s74, %s75
    %p84 = scmp.eq.s32.totalorder %s17, 0
    %p85 = por %p83, %p84
    %p86 = scmp.ne.s32.totalorder %s74, %s75
    %p87 = scmp.eq.s32.totalorder %s18, 1
    %p88 = por %p86, %p87
    %p90 = scmp.ne.s32.totalorder %s75, %s89
    %p91 = scmp.eq.s32.totalorder %s18, 0
    %p92 = por %p90, %p91
    %s94 = sadd.s32 %s93, 1
    %p97 = scmp.eq.s32.totalorder %s12, 1
    %p98 = scmp.ne.s32.totalorder %s93, %s95
    %p99 = scmp.eq.s32.totalorder %s12, 0
    %p100 = por %p98, %p99
    %p101 = scmp.ne.s32.totalorder %s93, %s95
    %p102 = scmp.eq.s32.totalorder %s17, 1
    %p103 = por %p101, %p102
    %p104 = scmp.ne.s32.totalorder %s95, %s96
    %p105 = scmp.eq.s32.totalorder %s17, 0
    %p106 = por %p104, %p105
    %p107 = scmp.ne.s32.totalorder %s95, %s96
    %p108 = scmp.eq.s32.totalorder %s18, 1
    %p109 = por %p107, %p108
    %p111 = scmp.ne.s32.totalorder %s96, %s110
    %p112 = scmp.eq.s32.totalorder %s18, 0
    %p113 = por %p111, %p112
    %s115 = sadd.s32 %s114, 1
    %p118 = scmp.eq.s32.totalorder %s12, 1
    %p119 = scmp.ne.s32.totalorder %s114, %s116
    %p120 = scmp.eq.s32.totalorder %s12, 0
    %p121 = por %p119, %p120
    %p122 = scmp.ne.s32.totalorder %s114, %s116
    %p123 = scmp.eq.s32.totalorder %s17, 1
    %p124 = por %p122, %p123
    %p125 = scmp.ne.s32.totalorder %s116, %s117
    %p126 = scmp.eq.s32.totalorder %s17, 0
    %p127 = por %p125, %p126
    %p128 = scmp.ne.s32.totalorder %s116, %s117
    %p129 = scmp.eq.s32.totalorder %s18, 1
    %p130 = por %p128, %p129
    %p132 = scmp.ne.s32.totalorder %s117, %s131
    %p133 = scmp.eq.s32.totalorder %s18, 0
    %p134 = por %p132, %p133
    %s136 = sadd.s32 %s135, 1
    %p139 = scmp.eq.s32.totalorder %s12, 1
    %p140 = scmp.ne.s32.totalorder %s135, %s137
    %p141 = scmp.eq.s32.totalorder %s12, 0
    %p142 = por %p140, %p141
    %p143 = scmp.ne.s32.totalorder %s135, %s137
    %p144 = scmp.eq.s32.totalorder %s17, 1
    %p145 = por %p143, %p144
    %p146 = scmp.ne.s32.totalorder %s137, %s138
    %p147 = scmp.eq.s32.totalorder %s17, 0
    %p148 = por %p146, %p147
    %p149 = scmp.ne.s32.totalorder %s137, %s138
    %p150 = scmp.eq.s32.totalorder %s18, 1
    %p151 = por %p149, %p150
    %p153 = scmp.ne.s32.totalorder %s138, %s152
    %p154 = scmp.eq.s32.totalorder %s18, 0
    %p155 = por %p153, %p154
    %s156 = ssub.s32 %s12, %s19
    %p157 = scmp.eq.s32.totalorder %s156, 0
    %s159 = sadd.s32 %s158, 1
    %s160 = scalar_select %p157, %s158, %s159
    %p163 = pneg %p157
    %p164 = scmp.eq.s32.totalorder %s12, 1
    %p165 = por %p163, %p164
    %p166 = scmp.ne.s32.totalorder %s158, %s161
    %p167 = scmp.eq.s32.totalorder %s12, 0
    %p168 = por %p166, %p167
    %p169 = scmp.ne.s32.totalorder %s158, %s161
    %p170 = scmp.eq.s32.totalorder %s17, 1
    %p171 = por %p169, %p170
    %p172 = scmp.ne.s32.totalorder %s161, %s162
    %p173 = scmp.eq.s32.totalorder %s17, 0
    %p174 = por %p172, %p173
    %p175 = scmp.ne.s32.totalorder %s161, %s162
    %p176 = scmp.eq.s32.totalorder %s18, 1
    %p177 = por %p175, %p176
    %p179 = scmp.ne.s32.totalorder %s162, %s178
    %p180 = scmp.eq.s32.totalorder %s18, 0
    %p181 = por %p179, %p180
    %p182 = scmp.le.s32.totalorder 1, %s12
    %p183 = scmp.lt.s32.totalorder %s12, 3
    %p184 = pnand %p182, %p183
    %p185 = pneg %p184
    // Predicated region
    $region9: #{mgat_forward.1} parent=5 // pred_check
      _
    $region10: #{mgat_forward.1} parent=5 // pred_check_branch
      %187 = sbr.rel (%p184) target = $region12
    $region11: #{mgat_forward.1} parent=5 // pred_region
      %s188 = ssub.s32 %s12, 1
      // Predicated region
      $region13: #{mgat_forward.1} parent=11 // pred_check
        %p189 = pneg %p85
      $region14: #{mgat_forward.1} parent=11 // pred_check_branch
        %191 = sbr.rel (%p189) target = $region16
      $region15: #{mgat_forward.1} parent=11 // pred_region
        _
      $region16: #{mgat_forward.1} parent=11 // pred_fallthru
        _
      // Predicated region
      $region17: #{mgat_forward.1} parent=11 // pred_check
        %p192 = pneg %p106
      $region18: #{mgat_forward.1} parent=11 // pred_check_branch
        %194 = sbr.rel (%p192) target = $region20
      $region19: #{mgat_forward.1} parent=11 // pred_region
        _
      $region20: #{mgat_forward.1} parent=11 // pred_fallthru
        _
      // Predicated region
      $region21: #{mgat_forward.1} parent=11 // pred_check
        %p195 = pneg %p127
      $region22: #{mgat_forward.1} parent=11 // pred_check_branch
        %197 = sbr.rel (%p195) target = $region24
      $region23: #{mgat_forward.1} parent=11 // pred_region
        _
      $region24: #{mgat_forward.1} parent=11 // pred_fallthru
        _
      // Predicated region
      $region25: #{mgat_forward.1} parent=11 // pred_check
        %p198 = pneg %p148
      $region26: #{mgat_forward.1} parent=11 // pred_check_branch
        %200 = sbr.rel (%p198) target = $region28
      $region27: #{mgat_forward.1} parent=11 // pred_region
        _
      $region28: #{mgat_forward.1} parent=11 // pred_fallthru
        _
    $region12: #{mgat_forward.1} parent=5 // pred_fallthru
      _
    %p201 = scmp.lt.s32.totalorder %s12, 2
    // Predicated region
    $region29: #{mgat_forward.1} parent=5 // pred_check
      %p202 = pneg %p201
    $region30: #{mgat_forward.1} parent=5 // pred_check_branch
      %204 = sbr.rel (%p202) target = $region32
    $region31: #{mgat_forward.1} parent=5 // pred_region
      // Predicated region
      $region33: #{mgat_forward.1} parent=31 // pred_check
        %p205 = pneg %p32
      $region34: #{mgat_forward.1} parent=31 // pred_check_branch
        %207 = sbr.rel (%p205) target = $region36
      $region35: #{mgat_forward.1} parent=31 // pred_region
        %p208 = scmp.lt.s32.totalorder %s12, 1
        %s209 = scalar_select %p208, %s12, 1
        %s210 = smul.addr %s209, 13
        %s211 = smul.addr %s210, 8
        %s212 = scalar_lea.vmem %s0, %s211
      $region36: #{mgat_forward.1} parent=31 // pred_fallthru
        _
      // Predicated region
      $region37: #{mgat_forward.1} parent=31 // pred_check
        %p213 = pneg %p58
      $region38: #{mgat_forward.1} parent=31 // pred_check_branch
        %215 = sbr.rel (%p213) target = $region40
      $region39: #{mgat_forward.1} parent=31 // pred_region
        %p216 = scmp.lt.s32.totalorder %s12, 1
        %s217 = scalar_select %p216, %s12, 1
        %s218 = smul.addr %s217, 16
        %s219 = smul.addr %s218, 8
        %s220 = scalar_lea.vmem %s1, %s219
      $region40: #{mgat_forward.1} parent=31 // pred_fallthru
        _
    $region32: #{mgat_forward.1} parent=5 // pred_fallthru
      _
    %p221 = scmp.le.s32.totalorder 1, %s12
    %p222 = scmp.lt.s32.totalorder %s12, 3
    %p223 = pnand %p221, %p222
    %p224 = pneg %p223
    // Predicated region
    $region41: #{mgat_forward.1} parent=5 // pred_check
      _
    $region42: #{mgat_forward.1} parent=5 // pred_check_branch
      %226 = sbr.rel (%p223) target = $region44
    $region43: #{mgat_forward.1} parent=5 // pred_region
      %s227 = ssub.s32 %s12, 1
      %p228 = scmp.lt.s32.totalorder %s17, 1
      %s229 = scalar_select %p228, %s17, 1
      %s230 = smul.addr %s229, 13
      %s231 = smul.addr %s230, 8
      %s232 = scalar_lea.vmem %s0, %s231
      %p233 = pneg %p38
      %p234 = pneg %p35
      %p235 = scmp.lt.s32.totalorder %s17, 1
      %s236 = scalar_select %p235, %s17, 1
      %s237 = smul.addr %s236, 16
      %s238 = smul.addr %s237, 8
      %s239 = scalar_lea.vmem %s1, %s238
      %p240 = pneg %p64
      %p241 = pneg %p61
      %p242 = pneg %p85
      %p243 = pneg %p82
      %p244 = pneg %p106
      %p245 = pneg %p103
      %p246 = pneg %p127
      %p247 = pneg %p124
      %p248 = pneg %p148
      %p249 = pneg %p145
      %p250 = pneg %p174
      %p251 = pneg %p171
      %p252 = scmp.lt.s32.totalorder %s17, 1
      %s253 = scalar_select %p252, %s17, 1
      %s254 = smul.addr %s253, 13
      %s255 = smul.addr %s254, 8
      %s256 = scalar_lea.vmem %s6, %s255
      %p257 = scmp.lt.s32.totalorder %s17, 1
      %s258 = scalar_select %p257, %s17, 1
      %s259 = smul.addr %s258, 13
      %s260 = smul.addr %s259, 8
      %s261 = scalar_lea.vmem %s0, %s260
      %p262 = scmp.lt.s32.totalorder %s17, 1
      %s263 = scalar_select %p262, %s17, 1
      %s264 = smul.addr %s263, 16
      %s265 = smul.addr %s264, 8
      %s266 = scalar_lea.vmem %s1, %s265
      %p267 = scmp.lt.s32.totalorder %s17, 1
      %s268 = scalar_select %p267, %s17, 1
      %s269 = smul.addr %s268, 13
      %s270 = smul.addr %s269, 8
      %s271 = scalar_lea.vmem %s6, %s270
      %v272 = vld [vmem:[%s261] sm:$0xff]
      %v273 = vld [vmem:[%s261 + $0x8] sm:$0xff]
      %v274 = vld [vmem:[%s261 + $0x10] sm:$0xff]
      %v275 = vld [vmem:[%s261 + $0x18] sm:$0xff]
      %v276 = vld [vmem:[%s261 + $0x20] sm:$0xff]
      %v277 = vld [vmem:[%s261 + $0x28] sm:$0xff]
      %v278 = vld [vmem:[%s261 + $0x30] sm:$0xff]
      %v279 = vld [vmem:[%s261 + $0x38] sm:$0xff]
      %v280 = vld [vmem:[%s261 + $0x40] sm:$0xff]
      %v281 = vld [vmem:[%s261 + $0x48] sm:$0xff]
      %v282 = vld [vmem:[%s261 + $0x50] sm:$0xff]
      %v283 = vld [vmem:[%s261 + $0x58] sm:$0xff]
      %v284 = vld [vmem:[%s261 + $0x60] sm:$0xf]
      %v285 = vld [vmem:[%s266] sm:$0xff]
      %v286 = vld [vmem:[%s266 + $0x8] sm:$0xff]
      %v287 = vld [vmem:[%s266 + $0x10] sm:$0xff]
      %v288 = vld [vmem:[%s266 + $0x18] sm:$0xff]
      %v289 = vld [vmem:[%s266 + $0x20] sm:$0xff]
      %v290 = vld [vmem:[%s266 + $0x28] sm:$0xff]
      %v291 = vld [vmem:[%s266 + $0x30] sm:$0xff]
      %v292 = vld [vmem:[%s266 + $0x38] sm:$0xff]
      %v293 = vld [vmem:[%s266 + $0x40] sm:$0xff]
      %v294 = vld [vmem:[%s266 + $0x48] sm:$0xff]
      %v295 = vld [vmem:[%s266 + $0x50] sm:$0xff]
      %v296 = vld [vmem:[%s266 + $0x58] sm:$0xff]
      %v297 = vld [vmem:[%s266 + $0x60] sm:$0xff]
      %v298 = vld [vmem:[%s266 + $0x68] sm:$0xff]
      %v299 = vld [vmem:[%s266 + $0x70] sm:$0xff]
      %v300 = vld [vmem:[%s266 + $0x78] sm:$0xff]
      %v301 = vld [vmem:[%s2] sm:$0xff]
      %v302 = vld [vmem:[%s2 + $0x10] sm:$0xff]
      %v303 = vld [vmem:[%s2 + $0x20] sm:$0xff]
      %v304 = vld [vmem:[%s2 + $0x30] sm:$0xff]
      %v305 = vld [vmem:[%s3] sm:$0x1]
      %v307 = vlaneseq
      %v308 = vshrl.u32 %v307, 7
      %v309 = vsub.s32 0, %v308
      %v310 = vrot.slane %v305, %v309
      %vm312 = vcmask 261120
      %v314 = vsel %vm312, %v272, 0
      %v317 = vsel %vm312, %v273, 0
      %v320 = vsel %vm312, %v274, 0
      %v323 = vsel %vm312, %v275, 0
      %v326 = vsel %vm312, %v276, 0
      %v329 = vsel %vm312, %v277, 0
      %v332 = vsel %vm312, %v278, 0
      %v335 = vsel %vm312, %v279, 0
      %v338 = vsel %vm312, %v280, 0
      %v341 = vsel %vm312, %v281, 0
      %v344 = vsel %vm312, %v282, 0
      %v347 = vsel %vm312, %v283, 0
      %v350 = vsel %vm312, %v284, 0
      %352 = vmatprep.subr.mxu0 0.0
      %353 = vmatpush1.msra.mxu0 %v301
      %354 = vmatprep.subr.mxu0 0.0
      %355 = vmatpush1.msra.mxu0 %v302
      %356 = vmatprep.subr.mxu0 0.0
      %357 = vmatpush1.msra.mxu0 %v303
      %358 = vmatprep.subr.mxu0 0.0
      %359 = vmatpush1.msra.mxu0 %v304
      %360 = vmatprep.subr.mxu0 0.0
      %361 = vmatpush1.msra.mxu0 0.0
      %362 = vmatprep.subr.mxu0 0.0
      %363 = vmatpush1.msra.mxu0 0.0
      %364 = vmatprep.subr.mxu0 0.0
      %365 = vmatpush1.msra.mxu0 0.0
      %366 = vmatprep.subr.mxu0 0.0
      %367 = vmatpush1.msra.mxu0 0.0
      %368 = vmatprep.subr.mxu0 0.0
      %369 = vmatpush1.msra.mxu0 0.0
      %370 = vmatprep.subr.mxu0 0.0
      %371 = vmatpush1.msra.mxu0 0.0
      %372 = vmatprep.subr.mxu0 0.0
      %373 = vmatpush1.msra.mxu0 0.0
      %374 = vmatprep.subr.mxu0 0.0
      %375 = vmatpush1.msra.mxu0 0.0
      %376 = vmatprep.subr.mxu0 0.0
      %377 = vmatpush1.msra.mxu0 0.0
      %378 = vmatprep.subr.mxu0 0.0
      %379 = vmatpush1.msra.mxu0 0.0
      %380 = vmatprep.subr.mxu0 0.0
      %381 = vmatpush1.msra.mxu0 0.0
      %382 = vmatprep.subr.mxu0 0.0
      %383 = vmatpush1.msra.mxu0 0.0
      %384 = vmatprep.subr.mxu0 0.0
      %385 = vmatpush1.msra.mxu0 0.0
      %386 = vmatprep.subr.mxu0 0.0
      %387 = vmatpush1.msra.mxu0 0.0
      %388 = vmatprep.subr.mxu0 0.0
      %389 = vmatpush1.msra.mxu0 0.0
      %390 = vmatprep.subr.mxu0 0.0
      %391 = vmatpush1.msra.mxu0 0.0
      %392 = vmatprep.subr.mxu0 0.0
      %393 = vmatpush1.msra.mxu0 0.0
      %394 = vmatprep.subr.mxu0 0.0
      %395 = vmatpush1.msra.mxu0 0.0
      %396 = vmatprep.subr.mxu0 0.0
      %397 = vmatpush1.msra.mxu0 0.0
      %398 = vmatprep.subr.mxu0 0.0
      %399 = vmatpush1.msra.mxu0 0.0
      %400 = vmatprep.subr.mxu0 0.0
      %401 = vmatpush1.msra.mxu0 0.0
      %402 = vmatprep.subr.mxu0 0.0
      %403 = vmatpush1.msra.mxu0 0.0
      %404 = vmatprep.subr.mxu0 0.0
      %405 = vmatpush1.msra.mxu0 0.0
      %406 = vmatprep.subr.mxu0 0.0
      %407 = vmatpush1.msra.mxu0 0.0
      %408 = vmatprep.subr.mxu0 0.0
      %409 = vmatpush1.msra.mxu0 0.0
      %410 = vmatprep.subr.mxu0 0.0
      %411 = vmatpush1.msra.mxu0 0.0
      %412 = vmatprep.subr.mxu0 0.0
      %413 = vmatpush1.msra.mxu0 0.0
      %414 = vmatprep.subr.mxu0 0.0
      %415 = vmatpush1.msra.mxu0 0.0
      %416 = vmatprep.mubr.f32.mxu0 0.0
      %417 = vmatmul.mubr.f32.gmra.mrb[0].mxu0 %v314
      %v418 = vpop.f32.mrb[0].mxu0
      %v419 = vadd.f32 %v310, %v418
      %v420 = vpop.f32.mrb[0].mxu0
      %421 = vmatprep.mubr.f32.mxu0 0.0
      %422 = vmatmul.mubr.f32.gmra.mrb[0].mxu0 %v317
      %v423 = vpop.f32.mrb[0].mxu0
      %v424 = vadd.f32 %v310, %v423
      %v425 = vpop.f32.mrb[0].mxu0
      %426 = vmatprep.mubr.f32.mxu0 0.0
      %427 = vmatmul.mubr.f32.gmra.mrb[0].mxu0 %v320
      %v428 = vpop.f32.mrb[0].mxu0
      %v429 = vadd.f32 %v310, %v428
      %v430 = vpop.f32.mrb[0].mxu0
      %431 = vmatprep.mubr.f32.mxu0 0.0
      %432 = vmatmul.mubr.f32.gmra.mrb[0].mxu0 %v323
      %v433 = vpop.f32.mrb[0].mxu0
      %v434 = vadd.f32 %v310, %v433
      %v435 = vpop.f32.mrb[0].mxu0
      %436 = vmatprep.mubr.f32.mxu0 0.0
      %437 = vmatmul.mubr.f32.gmra.mrb[0].mxu0 %v326
      %v438 = vpop.f32.mrb[0].mxu0
      %v439 = vadd.f32 %v310, %v438
      %v440 = vpop.f32.mrb[0].mxu0
      %441 = vmatprep.mubr.f32.mxu0 0.0
      %442 = vmatmul.mubr.f32.gmra.mrb[0].mxu0 %v329
      %v443 = vpop.f32.mrb[0].mxu0
      %v444 = vadd.f32 %v310, %v443
      %v445 = vpop.f32.mrb[0].mxu0
      %446 = vmatprep.mubr.f32.mxu0 0.0
      %447 = vmatmul.mubr.f32.gmra.mrb[0].mxu0 %v332
      %v448 = vpop.f32.mrb[0].mxu0
      %v449 = vadd.f32 %v310, %v448
      %v450 = vpop.f32.mrb[0].mxu0
      %451 = vmatprep.mubr.f32.mxu0 0.0
      %452 = vmatmul.mubr.f32.gmra.mrb[0].mxu0 %v335
      %v453 = vpop.f32.mrb[0].mxu0
      %v454 = vadd.f32 %v310, %v453
      %v455 = vpop.f32.mrb[0].mxu0
      %456 = vmatprep.mubr.f32.mxu0 0.0
      %457 = vmatmul.mubr.f32.gmra.mrb[0].mxu0 %v338
      %v458 = vpop.f32.mrb[0].mxu0
      %v459 = vadd.f32 %v310, %v458
      %v460 = vpop.f32.mrb[0].mxu0
      %461 = vmatprep.mubr.f32.mxu0 0.0
      %462 = vmatmul.mubr.f32.gmra.mrb[0].mxu0 %v341
      %v463 = vpop.f32.mrb[0].mxu0
      %v464 = vadd.f32 %v310, %v463
      %v465 = vpop.f32.mrb[0].mxu0
      %466 = vmatprep.mubr.f32.mxu0 0.0
      %467 = vmatmul.mubr.f32.gmra.mrb[0].mxu0 %v344
      %v468 = vpop.f32.mrb[0].mxu0
      %v469 = vadd.f32 %v310, %v468
      %v470 = vpop.f32.mrb[0].mxu0
      %471 = vmatprep.mubr.f32.mxu0 0.0
      %472 = vmatmul.mubr.f32.gmra.mrb[0].mxu0 %v347
      %v473 = vpop.f32.mrb[0].mxu0
      %v474 = vadd.f32 %v310, %v473
      %v475 = vpop.f32.mrb[0].mxu0
      %476 = vmatprep.mubr.f32.mxu0 0.0
      %477 = vmatmul.mubr.f32.gmra.mrb[0].mxu0 %v350
      %v478 = vpop.f32.mrb[0].mxu0
      %v479 = vadd.f32 %v310, %v478
      %v480 = vpop.f32.mrb[0].mxu0
      %481 = vdwg.mxu0
      %482 = vmatprep.subr.mxu0 0.0
      %483 = vmatpush1.xpose.msra.mxu0 %v285
      %484 = vmatprep.subr.mxu0 0.0
      %485 = vmatpush1.xpose.msra.mxu0 %v286
      %486 = vmatprep.subr.mxu0 0.0
      %487 = vmatpush1.xpose.msra.mxu0 %v287
      %488 = vmatprep.subr.mxu0 0.0
      %489 = vmatpush1.xpose.msra.mxu0 %v288
      %490 = vmatprep.subr.mxu0 0.0
      %491 = vmatpush1.xpose.msra.mxu0 %v289
      %492 = vmatprep.subr.mxu0 0.0
      %493 = vmatpush1.xpose.msra.mxu0 %v290
      %494 = vmatprep.subr.mxu0 0.0
      %495 = vmatpush1.xpose.msra.mxu0 %v291
      %496 = vmatprep.subr.mxu0 0.0
      %497 = vmatpush1.xpose.msra.mxu0 %v292
      %498 = vmatprep.subr.mxu0 0.0
      %499 = vmatpush1.xpose.msra.mxu0 %v293
      %500 = vmatprep.subr.mxu0 0.0
      %501 = vmatpush1.xpose.msra.mxu0 %v294
      %502 = vmatprep.subr.mxu0 0.0
      %503 = vmatpush1.xpose.msra.mxu0 %v295
      %504 = vmatprep.subr.mxu0 0.0
      %505 = vmatpush1.xpose.msra.mxu0 %v296
      %506 = vmatprep.subr.mxu0 0.0
      %507 = vmatpush1.xpose.msra.mxu0 %v297
      %508 = vmatprep.subr.mxu0 0.0
      %509 = vmatpush1.xpose.msra.mxu0 %v298
      %510 = vmatprep.subr.mxu0 0.0
      %511 = vmatpush1.xpose.msra.mxu0 %v299
      %512 = vmatprep.subr.mxu0 0.0
      %513 = vmatpush1.xpose.msra.mxu0 %v300
      %514 = vmatprep.subr.mxu0 0.0
      %515 = vmatpush1.xpose.msra.mxu0 0.0
      %516 = vmatprep.subr.mxu0 0.0
      %517 = vmatpush1.xpose.msra.mxu0 0.0
      %518 = vmatprep.subr.mxu0 0.0
      %519 = vmatpush1.xpose.msra.mxu0 0.0
      %520 = vmatprep.subr.mxu0 0.0
      %521 = vmatpush1.xpose.msra.mxu0 0.0
      %522 = vmatprep.subr.mxu0 0.0
      %523 = vmatpush1.xpose.msra.mxu0 0.0
      %524 = vmatprep.subr.mxu0 0.0
      %525 = vmatpush1.xpose.msra.mxu0 0.0
      %526 = vmatprep.subr.mxu0 0.0
      %527 = vmatpush1.xpose.msra.mxu0 0.0
      %528 = vmatprep.subr.mxu0 0.0
      %529 = vmatpush1.xpose.msra.mxu0 0.0
      %530 = vmatprep.subr.mxu0 0.0
      %531 = vmatpush1.xpose.msra.mxu0 0.0
      %532 = vmatprep.subr.mxu0 0.0
      %533 = vmatpush1.xpose.msra.mxu0 0.0
      %534 = vmatprep.subr.mxu0 0.0
      %535 = vmatpush1.xpose.msra.mxu0 0.0
      %536 = vmatprep.subr.mxu0 0.0
      %537 = vmatpush1.xpose.msra.mxu0 0.0
      %538 = vmatprep.subr.mxu0 0.0
      %539 = vmatpush1.xpose.msra.mxu0 0.0
      %540 = vmatprep.subr.mxu0 0.0
      %541 = vmatpush1.xpose.msra.mxu0 0.0
      %542 = vmatprep.subr.mxu0 0.0
      %543 = vmatpush1.xpose.msra.mxu0 0.0
      %544 = vmatprep.subr.mxu0 0.0
      %545 = vmatpush1.xpose.msra.mxu0 0.0
      %546 = vmatprep.mubr.f32.mxu0 0.0
      %547 = vmatmul.mubr.f32.gmra.mrb[0].mxu0 %v419
      %v548 = vpop.f32.mrb[0].mxu0
      %v549 = vadd.f32 0.0, %v548
      %v550 = vpop.f32.mrb[0].mxu0
      %551 = vmatprep.mubr.f32.mxu0 0.0
      %552 = vmatmul.mubr.f32.gmra.mrb[0].mxu0 %v424
      %v553 = vpop.f32.mrb[0].mxu0
      %v554 = vadd.f32 0.0, %v553
      %v555 = vpop.f32.mrb[0].mxu0
      %556 = vmatprep.mubr.f32.mxu0 0.0
      %557 = vmatmul.mubr.f32.gmra.mrb[0].mxu0 %v429
      %v558 = vpop.f32.mrb[0].mxu0
      %v559 = vadd.f32 0.0, %v558
      %v560 = vpop.f32.mrb[0].mxu0
      %561 = vmatprep.mubr.f32.mxu0 0.0
      %562 = vmatmul.mubr.f32.gmra.mrb[0].mxu0 %v434
      %v563 = vpop.f32.mrb[0].mxu0
      %v564 = vadd.f32 0.0, %v563
      %v565 = vpop.f32.mrb[0].mxu0
      %566 = vmatprep.mubr.f32.mxu0 0.0
      %567 = vmatmul.mubr.f32.gmra.mrb[0].mxu0 %v439
      %v568 = vpop.f32.mrb[0].mxu0
      %v569 = vadd.f32 0.0, %v568
      %v570 = vpop.f32.mrb[0].mxu0
      %571 = vmatprep.mubr.f32.mxu0 0.0
      %572 = vmatmul.mubr.f32.gmra.mrb[0].mxu0 %v444
      %v573 = vpop.f32.mrb[0].mxu0
      %v574 = vadd.f32 0.0, %v573
      %v575 = vpop.f32.mrb[0].mxu0
      %576 = vmatprep.mubr.f32.mxu0 0.0
      %577 = vmatmul.mubr.f32.gmra.mrb[0].mxu0 %v449
      %v578 = vpop.f32.mrb[0].mxu0
      %v579 = vadd.f32 0.0, %v578
      %v580 = vpop.f32.mrb[0].mxu0
      %581 = vmatprep.mubr.f32.mxu0 0.0
      %582 = vmatmul.mubr.f32.gmra.mrb[0].mxu0 %v454
      %v583 = vpop.f32.mrb[0].mxu0
      %v584 = vadd.f32 0.0, %v583
      %v585 = vpop.f32.mrb[0].mxu0
      %586 = vmatprep.mubr.f32.mxu0 0.0
      %587 = vmatmul.mubr.f32.gmra.mrb[0].mxu0 %v459
      %v588 = vpop.f32.mrb[0].mxu0
      %v589 = vadd.f32 0.0, %v588
      %v590 = vpop.f32.mrb[0].mxu0
      %591 = vmatprep.mubr.f32.mxu0 0.0
      %592 = vmatmul.mubr.f32.gmra.mrb[0].mxu0 %v464
      %v593 = vpop.f32.mrb[0].mxu0
      %v594 = vadd.f32 0.0, %v593
      %v595 = vpop.f32.mrb[0].mxu0
      %596 = vmatprep.mubr.f32.mxu0 0.0
      %597 = vmatmul.mubr.f32.gmra.mrb[0].mxu0 %v469
      %v598 = vpop.f32.mrb[0].mxu0
      %v599 = vadd.f32 0.0, %v598
      %v600 = vpop.f32.mrb[0].mxu0
      %601 = vmatprep.mubr.f32.mxu0 0.0
      %602 = vmatmul.mubr.f32.gmra.mrb[0].mxu0 %v474
      %v603 = vpop.f32.mrb[0].mxu0
      %v604 = vadd.f32 0.0, %v603
      %v605 = vpop.f32.mrb[0].mxu0
      %606 = vmatprep.mubr.f32.mxu0 0.0
      %607 = vmatmul.mubr.f32.gmra.mrb[0].mxu0 %v479
      %v608 = vpop.f32.mrb[0].mxu0
      %v609 = vadd.f32 0.0, %v608
      %v610 = vpop.f32.mrb[0].mxu0
      %611 = vdwg.mxu0
      %612 = vmatprep.subr.mxu0 0.0
      %613 = vmatpush1.xpose.msra.mxu0 %v419
      %614 = vmatprep.subr.mxu0 0.0
      %615 = vmatpush1.xpose.msra.mxu0 %v424
      %616 = vmatprep.subr.mxu0 0.0
      %617 = vmatpush1.xpose.msra.mxu0 %v429
      %618 = vmatprep.subr.mxu0 0.0
      %619 = vmatpush1.xpose.msra.mxu0 %v434
      %620 = vmatprep.subr.mxu0 0.0
      %621 = vmatpush1.xpose.msra.mxu0 %v439
      %622 = vmatprep.subr.mxu0 0.0
      %623 = vmatpush1.xpose.msra.mxu0 %v444
      %624 = vmatprep.subr.mxu0 0.0
      %625 = vmatpush1.xpose.msra.mxu0 %v449
      %626 = vmatprep.subr.mxu0 0.0
      %627 = vmatpush1.xpose.msra.mxu0 %v454
      %628 = vmatprep.subr.mxu0 0.0
      %629 = vmatpush1.xpose.msra.mxu0 %v459
      %630 = vmatprep.subr.mxu0 0.0
      %631 = vmatpush1.xpose.msra.mxu0 %v464
      %632 = vmatprep.subr.mxu0 0.0
      %633 = vmatpush1.xpose.msra.mxu0 %v469
      %634 = vmatprep.subr.mxu0 0.0
      %635 = vmatpush1.xpose.msra.mxu0 %v474
      %636 = vmatprep.subr.mxu0 0.0
      %637 = vmatpush1.xpose.msra.mxu0 %v479
      %638 = vmatprep.subr.mxu0 0.0
      %639 = vmatpush1.xpose.msra.mxu0 0.0
      %640 = vmatprep.subr.mxu0 0.0
      %641 = vmatpush1.xpose.msra.mxu0 0.0
      %642 = vmatprep.subr.mxu0 0.0
      %643 = vmatpush1.xpose.msra.mxu0 0.0
      %644 = vmatprep.subr.mxu0 0.0
      %645 = vmatpush1.xpose.msra.mxu0 0.0
      %646 = vmatprep.subr.mxu0 0.0
      %647 = vmatpush1.xpose.msra.mxu0 0.0
      %648 = vmatprep.subr.mxu0 0.0
      %649 = vmatpush1.xpose.msra.mxu0 0.0
      %650 = vmatprep.subr.mxu0 0.0
      %651 = vmatpush1.xpose.msra.mxu0 0.0
      %652 = vmatprep.subr.mxu0 0.0
      %653 = vmatpush1.xpose.msra.mxu0 0.0
      %654 = vmatprep.subr.mxu0 0.0
      %655 = vmatpush1.xpose.msra.mxu0 0.0
      %656 = vmatprep.subr.mxu0 0.0
      %657 = vmatpush1.xpose.msra.mxu0 0.0
      %658 = vmatprep.subr.mxu0 0.0
      %659 = vmatpush1.xpose.msra.mxu0 0.0
      %660 = vmatprep.subr.mxu0 0.0
      %661 = vmatpush1.xpose.msra.mxu0 0.0
      %662 = vmatprep.subr.mxu0 0.0
      %663 = vmatpush1.xpose.msra.mxu0 0.0
      %664 = vmatprep.subr.mxu0 0.0
      %665 = vmatpush1.xpose.msra.mxu0 0.0
      %666 = vmatprep.subr.mxu0 0.0
      %667 = vmatpush1.xpose.msra.mxu0 0.0
      %668 = vmatprep.subr.mxu0 0.0
      %669 = vmatpush1.xpose.msra.mxu0 0.0
      %670 = vmatprep.subr.mxu0 0.0
      %671 = vmatpush1.xpose.msra.mxu0 0.0
      %672 = vmatprep.subr.mxu0 0.0
      %673 = vmatpush1.xpose.msra.mxu0 0.0
      %674 = vmatprep.subr.mxu0 0.0
      %675 = vmatpush1.xpose.msra.mxu0 0.0
      %676 = vmatprep.mubr.f32.mxu0 0.0
      %677 = vmatmul.mubr.f32.gmra.mrb[0].mxu0 %v549
      %v678 = vpop.f32.mrb[0].mxu0
      %v679 = vadd.f32 0.0, %v678
      %v680 = vpop.f32.mrb[0].mxu0
      %681 = vmatprep.mubr.f32.mxu0 0.0
      %682 = vmatmul.mubr.f32.gmra.mrb[0].mxu0 %v554
      %v683 = vpop.f32.mrb[0].mxu0
      %v684 = vadd.f32 0.0, %v683
      %v685 = vpop.f32.mrb[0].mxu0
      %686 = vmatprep.mubr.f32.mxu0 0.0
      %687 = vmatmul.mubr.f32.gmra.mrb[0].mxu0 %v559
      %v688 = vpop.f32.mrb[0].mxu0
      %v689 = vadd.f32 0.0, %v688
      %v690 = vpop.f32.mrb[0].mxu0
      %691 = vmatprep.mubr.f32.mxu0 0.0
      %692 = vmatmul.mubr.f32.gmra.mrb[0].mxu0 %v564
      %v693 = vpop.f32.mrb[0].mxu0
      %v694 = vadd.f32 0.0, %v693
      %v695 = vpop.f32.mrb[0].mxu0
      %696 = vmatprep.mubr.f32.mxu0 0.0
      %697 = vmatmul.mubr.f32.gmra.mrb[0].mxu0 %v569
      %v698 = vpop.f32.mrb[0].mxu0
      %v699 = vadd.f32 0.0, %v698
      %v700 = vpop.f32.mrb[0].mxu0
      %701 = vmatprep.mubr.f32.mxu0 0.0
      %702 = vmatmul.mubr.f32.gmra.mrb[0].mxu0 %v574
      %v703 = vpop.f32.mrb[0].mxu0
      %v704 = vadd.f32 0.0, %v703
      %v705 = vpop.f32.mrb[0].mxu0
      %706 = vmatprep.mubr.f32.mxu0 0.0
      %707 = vmatmul.mubr.f32.gmra.mrb[0].mxu0 %v579
      %v708 = vpop.f32.mrb[0].mxu0
      %v709 = vadd.f32 0.0, %v708
      %v710 = vpop.f32.mrb[0].mxu0
      %711 = vmatprep.mubr.f32.mxu0 0.0
      %712 = vmatmul.mubr.f32.gmra.mrb[0].mxu0 %v584
      %v713 = vpop.f32.mrb[0].mxu0
      %v714 = vadd.f32 0.0, %v713
      %v715 = vpop.f32.mrb[0].mxu0
      %716 = vmatprep.mubr.f32.mxu0 0.0
      %717 = vmatmul.mubr.f32.gmra.mrb[0].mxu0 %v589
      %v718 = vpop.f32.mrb[0].mxu0
      %v719 = vadd.f32 0.0, %v718
      %v720 = vpop.f32.mrb[0].mxu0
      %721 = vmatprep.mubr.f32.mxu0 0.0
      %722 = vmatmul.mubr.f32.gmra.mrb[0].mxu0 %v594
      %v723 = vpop.f32.mrb[0].mxu0
      %v724 = vadd.f32 0.0, %v723
      %v725 = vpop.f32.mrb[0].mxu0
      %726 = vmatprep.mubr.f32.mxu0 0.0
      %727 = vmatmul.mubr.f32.gmra.mrb[0].mxu0 %v599
      %v728 = vpop.f32.mrb[0].mxu0
      %v729 = vadd.f32 0.0, %v728
      %v730 = vpop.f32.mrb[0].mxu0
      %731 = vmatprep.mubr.f32.mxu0 0.0
      %732 = vmatmul.mubr.f32.gmra.mrb[0].mxu0 %v604
      %v733 = vpop.f32.mrb[0].mxu0
      %v734 = vadd.f32 0.0, %v733
      %v735 = vpop.f32.mrb[0].mxu0
      %736 = vmatprep.mubr.f32.mxu0 0.0
      %737 = vmatmul.mubr.f32.gmra.mrb[0].mxu0 %v609
      %v738 = vpop.f32.mrb[0].mxu0
      %v739 = vadd.f32 0.0, %v738
      %v740 = vpop.f32.mrb[0].mxu0
      %741 = vdwg.mxu0
      %vm742 = vcmask 818176
      %v743 = vsel %vm742, %v679, -inf
      %744 = vmax.xlane.f32.xlu0 %v743
      %v745 = vpop.xlane.xlu0 %744
      %v746 = vsel %vm742, %v684, -inf
      %747 = vmax.xlane.f32.xlu0 %v746
      %v748 = vpop.xlane.xlu0 %747
      %v749 = vsel %vm742, %v689, -inf
      %750 = vmax.xlane.f32.xlu0 %v749
      %v751 = vpop.xlane.xlu0 %750
      %v752 = vsel %vm742, %v694, -inf
      %753 = vmax.xlane.f32.xlu0 %v752
      %v754 = vpop.xlane.xlu0 %753
      %v755 = vsel %vm742, %v699, -inf
      %756 = vmax.xlane.f32.xlu0 %v755
      %v757 = vpop.xlane.xlu0 %756
      %v758 = vsel %vm742, %v704, -inf
      %759 = vmax.xlane.f32.xlu0 %v758
      %v760 = vpop.xlane.xlu0 %759
      %v761 = vsel %vm742, %v709, -inf
      %762 = vmax.xlane.f32.xlu0 %v761
      %v763 = vpop.xlane.xlu0 %762
      %v764 = vsel %vm742, %v714, -inf
      %765 = vmax.xlane.f32.xlu0 %v764
      %v766 = vpop.xlane.xlu0 %765
      %v767 = vsel %vm742, %v719, -inf
      %768 = vmax.xlane.f32.xlu0 %v767
      %v769 = vpop.xlane.xlu0 %768
      %v770 = vsel %vm742, %v724, -inf
      %771 = vmax.xlane.f32.xlu0 %v770
      %v772 = vpop.xlane.xlu0 %771
      %v773 = vsel %vm742, %v729, -inf
      %774 = vmax.xlane.f32.xlu0 %v773
      %v775 = vpop.xlane.xlu0 %774
      %v776 = vsel %vm742, %v734, -inf
      %777 = vmax.xlane.f32.xlu0 %v776
      %v778 = vpop.xlane.xlu0 %777
      %vm779 = vcmask 814080
      %v780 = vsel %vm779, %v739, -inf
      %781 = vmax.xlane.f32.xlu0 %v780
      %v782 = vpop.xlane.xlu0 %781
      %v783 = vsub.f32 %v679, %v745
      %v784 = vsub.f32 %v684, %v748
      %v785 = vsub.f32 %v689, %v751
      %v786 = vsub.f32 %v694, %v754
      %v787 = vsub.f32 %v699, %v757
      %v788 = vsub.f32 %v704, %v760
      %v789 = vsub.f32 %v709, %v763
      %v790 = vsub.f32 %v714, %v766
      %v791 = vsub.f32 %v719, %v769
      %v792 = vsub.f32 %v724, %v772
      %v793 = vsub.f32 %v729, %v775
      %v794 = vsub.f32 %v734, %v778
      %v795 = vsub.f32 %v739, %v782
      %v796 = vmul.f32 %v783, 1.442695
      %v797 = vpow.pop %v796
      %v798 = vmul.f32 %v784, 1.442695
      %v799 = vpow.pop %v798
      %v800 = vmul.f32 %v785, 1.442695
      %v801 = vpow.pop %v800
      %v802 = vmul.f32 %v786, 1.442695
      %v803 = vpow.pop %v802
      %v804 = vmul.f32 %v787, 1.442695
      %v805 = vpow.pop %v804
      %v806 = vmul.f32 %v788, 1.442695
      %v807 = vpow.pop %v806
      %v808 = vmul.f32 %v789, 1.442695
      %v809 = vpow.pop %v808
      %v810 = vmul.f32 %v790, 1.442695
      %v811 = vpow.pop %v810
      %v812 = vmul.f32 %v791, 1.442695
      %v813 = vpow.pop %v812
      %v814 = vmul.f32 %v792, 1.442695
      %v815 = vpow.pop %v814
      %v816 = vmul.f32 %v793, 1.442695
      %v817 = vpow.pop %v816
      %v818 = vmul.f32 %v794, 1.442695
      %v819 = vpow.pop %v818
      %v820 = vmul.f32 %v795, 1.442695
      %v821 = vpow.pop %v820
      %v822 = vsel %vm742, %v797, 0.0
      %823 = vadd.xlane.f32.xlu0 %v822
      %v824 = vpop.xlane.xlu0 %823
      %v825 = vsel %vm742, %v799, 0.0
      %826 = vadd.xlane.f32.xlu0 %v825
      %v827 = vpop.xlane.xlu0 %826
      %v828 = vsel %vm742, %v801, 0.0
      %829 = vadd.xlane.f32.xlu0 %v828
      %v830 = vpop.xlane.xlu0 %829
      %v831 = vsel %vm742, %v803, 0.0
      %832 = vadd.xlane.f32.xlu0 %v831
      %v833 = vpop.xlane.xlu0 %832
      %v834 = vsel %vm742, %v805, 0.0
      %835 = vadd.xlane.f32.xlu0 %v834
      %v836 = vpop.xlane.xlu0 %835
      %v837 = vsel %vm742, %v807, 0.0
      %838 = vadd.xlane.f32.xlu0 %v837
      %v839 = vpop.xlane.xlu0 %838
      %v840 = vsel %vm742, %v809, 0.0
      %841 = vadd.xlane.f32.xlu0 %v840
      %v842 = vpop.xlane.xlu0 %841
      %v843 = vsel %vm742, %v811, 0.0
      %844 = vadd.xlane.f32.xlu0 %v843
      %v845 = vpop.xlane.xlu0 %844
      %v846 = vsel %vm742, %v813, 0.0
      %847 = vadd.xlane.f32.xlu0 %v846
      %v848 = vpop.xlane.xlu0 %847
      %v849 = vsel %vm742, %v815, 0.0
      %850 = vadd.xlane.f32.xlu0 %v849
      %v851 = vpop.xlane.xlu0 %850
      %v852 = vsel %vm742, %v817, 0.0
      %853 = vadd.xlane.f32.xlu0 %v852
      %v854 = vpop.xlane.xlu0 %853
      %v855 = vsel %vm742, %v819, 0.0
      %856 = vadd.xlane.f32.xlu0 %v855
      %v857 = vpop.xlane.xlu0 %856
      %v858 = vsel %vm779, %v821, 0.0
      %859 = vadd.xlane.f32.xlu0 %v858
      %v860 = vpop.xlane.xlu0 %859
      %v861 = vrcp.pop %v824
      %v862 = vrcp.pop %v827
      %v863 = vrcp.pop %v830
      %v864 = vrcp.pop %v833
      %v865 = vrcp.pop %v836
      %v866 = vrcp.pop %v839
      %v867 = vrcp.pop %v842
      %v868 = vrcp.pop %v845
      %v869 = vrcp.pop %v848
      %v870 = vrcp.pop %v851
      %v871 = vrcp.pop %v854
      %v872 = vrcp.pop %v857
      %v873 = vrcp.pop %v860
      %v874 = vmul.f32 %v797, %v861
      %v875 = vmul.f32 %v799, %v862
      %v876 = vmul.f32 %v801, %v863
      %v877 = vmul.f32 %v803, %v864
      %v878 = vmul.f32 %v805, %v865
      %v879 = vmul.f32 %v807, %v866
      %v880 = vmul.f32 %v809, %v867
      %v881 = vmul.f32 %v811, %v868
      %v882 = vmul.f32 %v813, %v869
      %v883 = vmul.f32 %v815, %v870
      %v884 = vmul.f32 %v817, %v871
      %v885 = vmul.f32 %v819, %v872
      %v886 = vmul.f32 %v821, %v873
      %v887 = vadd.f32 %v874, 0.0
      %v888 = vadd.f32 %v875, 0.0
      %v889 = vadd.f32 %v876, 0.0
      %v890 = vadd.f32 %v877, 0.0
      %v891 = vadd.f32 %v878, 0.0
      %v892 = vadd.f32 %v879, 0.0
      %v893 = vadd.f32 %v880, 0.0
      %v894 = vadd.f32 %v881, 0.0
      %v895 = vadd.f32 %v882, 0.0
      %v896 = vadd.f32 %v883, 0.0
      %v897 = vadd.f32 %v884, 0.0
      %v898 = vadd.f32 %v885, 0.0
      %v899 = vadd.f32 %v886, 0.0
      %v900 = vld [vmem:[%s2 + $0x8] sm:$0xff]
      %v901 = vld [vmem:[%s2 + $0x18] sm:$0xff]
      %v902 = vld [vmem:[%s2 + $0x28] sm:$0xff]
      %v903 = vld [vmem:[%s2 + $0x38] sm:$0xff]
      %v904 = vld [vmem:[%s3 + $0x1] sm:$0x1]
      %v906 = vlaneseq
      %v907 = vshrl.u32 %v906, 7
      %v908 = vsub.s32 0, %v907
      %v909 = vrot.slane %v904, %v908
      %911 = vmatprep.subr.mxu0 0.0
      %912 = vmatpush1.msra.mxu0 %v900
      %913 = vmatprep.subr.mxu0 0.0
      %914 = vmatpush1.msra.mxu0 %v901
      %915 = vmatprep.subr.mxu0 0.0
      %916 = vmatpush1.msra.mxu0 %v902
      %917 = vmatprep.subr.mxu0 0.0
      %918 = vmatpush1.msra.mxu0 %v903
      %919 = vmatprep.subr.mxu0 0.0
      %920 = vmatpush1.msra.mxu0 0.0
      %921 = vmatprep.subr.mxu0 0.0
      %922 = vmatpush1.msra.mxu0 0.0
      %923 = vmatprep.subr.mxu0 0.0
      %924 = vmatpush1.msra.mxu0 0.0
      %925 = vmatprep.subr.mxu0 0.0
      %926 = vmatpush1.msra.mxu0 0.0
      %927 = vmatprep.subr.mxu0 0.0
      %928 = vmatpush1.msra.mxu0 0.0
      %929 = vmatprep.subr.mxu0 0.0
      %930 = vmatpush1.msra.mxu0 0.0
      %931 = vmatprep.subr.mxu0 0.0
      %932 = vmatpush1.msra.mxu0 0.0
      %933 = vmatprep.subr.mxu0 0.0
      %934 = vmatpush1.msra.mxu0 0.0
      %935 = vmatprep.subr.mxu0 0.0
      %936 = vmatpush1.msra.mxu0 0.0
      %937 = vmatprep.subr.mxu0 0.0
      %938 = vmatpush1.msra.mxu0 0.0
      %939 = vmatprep.subr.mxu0 0.0
      %940 = vmatpush1.msra.mxu0 0.0
      %941 = vmatprep.subr.mxu0 0.0
      %942 = vmatpush1.msra.mxu0 0.0
      %943 = vmatprep.subr.mxu0 0.0
      %944 = vmatpush1.msra.mxu0 0.0
      %945 = vmatprep.subr.mxu0 0.0
      %946 = vmatpush1.msra.mxu0 0.0
      %947 = vmatprep.subr.mxu0 0.0
      %948 = vmatpush1.msra.mxu0 0.0
      %949 = vmatprep.subr.mxu0 0.0
      %950 = vmatpush1.msra.mxu0 0.0
      %951 = vmatprep.subr.mxu0 0.0
      %952 = vmatpush1.msra.mxu0 0.0
      %953 = vmatprep.subr.mxu0 0.0
      %954 = vmatpush1.msra.mxu0 0.0
      %955 = vmatprep.subr.mxu0 0.0
      %956 = vmatpush1.msra.mxu0 0.0
      %957 = vmatprep.subr.mxu0 0.0
      %958 = vmatpush1.msra.mxu0 0.0
      %959 = vmatprep.subr.mxu0 0.0
      %960 = vmatpush1.msra.mxu0 0.0
      %961 = vmatprep.subr.mxu0 0.0
      %962 = vmatpush1.msra.mxu0 0.0
      %963 = vmatprep.subr.mxu0 0.0
      %964 = vmatpush1.msra.mxu0 0.0
      %965 = vmatprep.subr.mxu0 0.0
      %966 = vmatpush1.msra.mxu0 0.0
      %967 = vmatprep.subr.mxu0 0.0
      %968 = vmatpush1.msra.mxu0 0.0
      %969 = vmatprep.subr.mxu0 0.0
      %970 = vmatpush1.msra.mxu0 0.0
      %971 = vmatprep.subr.mxu0 0.0
      %972 = vmatpush1.msra.mxu0 0.0
      %973 = vmatprep.subr.mxu0 0.0
      %974 = vmatpush1.msra.mxu0 0.0
      %975 = vmatprep.mubr.f32.mxu0 0.0
      %976 = vmatmul.mubr.f32.gmra.mrb[0].mxu0 %v314
      %v977 = vpop.f32.mrb[0].mxu0
      %v978 = vadd.f32 %v909, %v977
      %v979 = vpop.f32.mrb[0].mxu0
      %980 = vmatprep.mubr.f32.mxu0 0.0
      %981 = vmatmul.mubr.f32.gmra.mrb[0].mxu0 %v317
      %v982 = vpop.f32.mrb[0].mxu0
      %v983 = vadd.f32 %v909, %v982
      %v984 = vpop.f32.mrb[0].mxu0
      %985 = vmatprep.mubr.f32.mxu0 0.0
      %986 = vmatmul.mubr.f32.gmra.mrb[0].mxu0 %v320
      %v987 = vpop.f32.mrb[0].mxu0
      %v988 = vadd.f32 %v909, %v987
      %v989 = vpop.f32.mrb[0].mxu0
      %990 = vmatprep.mubr.f32.mxu0 0.0
      %991 = vmatmul.mubr.f32.gmra.mrb[0].mxu0 %v323
      %v992 = vpop.f32.mrb[0].mxu0
      %v993 = vadd.f32 %v909, %v992
      %v994 = vpop.f32.mrb[0].mxu0
      %995 = vmatprep.mubr.f32.mxu0 0.0
      %996 = vmatmul.mubr.f32.gmra.mrb[0].mxu0 %v326
      %v997 = vpop.f32.mrb[0].mxu0
      %v998 = vadd.f32 %v909, %v997
      %v999 = vpop.f32.mrb[0].mxu0
      %1000 = vmatprep.mubr.f32.mxu0 0.0
      %1001 = vmatmul.mubr.f32.gmra.mrb[0].mxu0 %v329
      %v1002 = vpop.f32.mrb[0].mxu0
      %v1003 = vadd.f32 %v909, %v1002
      %v1004 = vpop.f32.mrb[0].mxu0
      %1005 = vmatprep.mubr.f32.mxu0 0.0
      %1006 = vmatmul.mubr.f32.gmra.mrb[0].mxu0 %v332
      %v1007 = vpop.f32.mrb[0].mxu0
      %v1008 = vadd.f32 %v909, %v1007
      %v1009 = vpop.f32.mrb[0].mxu0
      %1010 = vmatprep.mubr.f32.mxu0 0.0
      %1011 = vmatmul.mubr.f32.gmra.mrb[0].mxu0 %v335
      %v1012 = vpop.f32.mrb[0].mxu0
      %v1013 = vadd.f32 %v909, %v1012
      %v1014 = vpop.f32.mrb[0].mxu0
      %1015 = vmatprep.mubr.f32.mxu0 0.0
      %1016 = vmatmul.mubr.f32.gmra.mrb[0].mxu0 %v338
      %v1017 = vpop.f32.mrb[0].mxu0
      %v1018 = vadd.f32 %v909, %v1017
      %v1019 = vpop.f32.mrb[0].mxu0
      %1020 = vmatprep.mubr.f32.mxu0 0.0
      %1021 = vmatmul.mubr.f32.gmra.mrb[0].mxu0 %v341
      %v1022 = vpop.f32.mrb[0].mxu0
      %v1023 = vadd.f32 %v909, %v1022
      %v1024 = vpop.f32.mrb[0].mxu0
      %1025 = vmatprep.mubr.f32.mxu0 0.0
      %1026 = vmatmul.mubr.f32.gmra.mrb[0].mxu0 %v344
      %v1027 = vpop.f32.mrb[0].mxu0
      %v1028 = vadd.f32 %v909, %v1027
      %v1029 = vpop.f32.mrb[0].mxu0
      %1030 = vmatprep.mubr.f32.mxu0 0.0
      %1031 = vmatmul.mubr.f32.gmra.mrb[0].mxu0 %v347
      %v1032 = vpop.f32.mrb[0].mxu0
      %v1033 = vadd.f32 %v909, %v1032
      %v1034 = vpop.f32.mrb[0].mxu0
      %1035 = vmatprep.mubr.f32.mxu0 0.0
      %1036 = vmatmul.mubr.f32.gmra.mrb[0].mxu0 %v350
      %v1037 = vpop.f32.mrb[0].mxu0
      %v1038 = vadd.f32 %v909, %v1037
      %v1039 = vpop.f32.mrb[0].mxu0
      %1040 = vdwg.mxu0
      %1041 = vmatprep.subr.mxu0 0.0
      %1042 = vmatpush1.xpose.msra.mxu0 %v285
      %1043 = vmatprep.subr.mxu0 0.0
      %1044 = vmatpush1.xpose.msra.mxu0 %v286
      %1045 = vmatprep.subr.mxu0 0.0
      %1046 = vmatpush1.xpose.msra.mxu0 %v287
      %1047 = vmatprep.subr.mxu0 0.0
      %1048 = vmatpush1.xpose.msra.mxu0 %v288
      %1049 = vmatprep.subr.mxu0 0.0
      %1050 = vmatpush1.xpose.msra.mxu0 %v289
      %1051 = vmatprep.subr.mxu0 0.0
      %1052 = vmatpush1.xpose.msra.mxu0 %v290
      %1053 = vmatprep.subr.mxu0 0.0
      %1054 = vmatpush1.xpose.msra.mxu0 %v291
      %1055 = vmatprep.subr.mxu0 0.0
      %1056 = vmatpush1.xpose.msra.mxu0 %v292
      %1057 = vmatprep.subr.mxu0 0.0
      %1058 = vmatpush1.xpose.msra.mxu0 %v293
      %1059 = vmatprep.subr.mxu0 0.0
      %1060 = vmatpush1.xpose.msra.mxu0 %v294
      %1061 = vmatprep.subr.mxu0 0.0
      %1062 = vmatpush1.xpose.msra.mxu0 %v295
      %1063 = vmatprep.subr.mxu0 0.0
      %1064 = vmatpush1.xpose.msra.mxu0 %v296
      %1065 = vmatprep.subr.mxu0 0.0
      %1066 = vmatpush1.xpose.msra.mxu0 %v297
      %1067 = vmatprep.subr.mxu0 0.0
      %1068 = vmatpush1.xpose.msra.mxu0 %v298
      %1069 = vmatprep.subr.mxu0 0.0
      %1070 = vmatpush1.xpose.msra.mxu0 %v299
      %1071 = vmatprep.subr.mxu0 0.0
      %1072 = vmatpush1.xpose.msra.mxu0 %v300
      %1073 = vmatprep.subr.mxu0 0.0
      %1074 = vmatpush1.xpose.msra.mxu0 0.0
      %1075 = vmatprep.subr.mxu0 0.0
      %1076 = vmatpush1.xpose.msra.mxu0 0.0
      %1077 = vmatprep.subr.mxu0 0.0
      %1078 = vmatpush1.xpose.msra.mxu0 0.0
      %1079 = vmatprep.subr.mxu0 0.0
      %1080 = vmatpush1.xpose.msra.mxu0 0.0
      %1081 = vmatprep.subr.mxu0 0.0
      %1082 = vmatpush1.xpose.msra.mxu0 0.0
      %1083 = vmatprep.subr.mxu0 0.0
      %1084 = vmatpush1.xpose.msra.mxu0 0.0
      %1085 = vmatprep.subr.mxu0 0.0
      %1086 = vmatpush1.xpose.msra.mxu0 0.0
      %1087 = vmatprep.subr.mxu0 0.0
      %1088 = vmatpush1.xpose.msra.mxu0 0.0
      %1089 = vmatprep.subr.mxu0 0.0
      %1090 = vmatpush1.xpose.msra.mxu0 0.0
      %1091 = vmatprep.subr.mxu0 0.0
      %1092 = vmatpush1.xpose.msra.mxu0 0.0
      %1093 = vmatprep.subr.mxu0 0.0
      %1094 = vmatpush1.xpose.msra.mxu0 0.0
      %1095 = vmatprep.subr.mxu0 0.0
      %1096 = vmatpush1.xpose.msra.mxu0 0.0
      %1097 = vmatprep.subr.mxu0 0.0
      %1098 = vmatpush1.xpose.msra.mxu0 0.0
      %1099 = vmatprep.subr.mxu0 0.0
      %1100 = vmatpush1.xpose.msra.mxu0 0.0
      %1101 = vmatprep.subr.mxu0 0.0
      %1102 = vmatpush1.xpose.msra.mxu0 0.0
      %1103 = vmatprep.subr.mxu0 0.0
      %1104 = vmatpush1.xpose.msra.mxu0 0.0
      %1105 = vmatprep.mubr.f32.mxu0 0.0
      %1106 = vmatmul.mubr.f32.gmra.mrb[0].mxu0 %v978
      %v1107 = vpop.f32.mrb[0].mxu0
      %v1108 = vadd.f32 0.0, %v1107
      %v1109 = vpop.f32.mrb[0].mxu0
      %1110 = vmatprep.mubr.f32.mxu0 0.0
      %1111 = vmatmul.mubr.f32.gmra.mrb[0].mxu0 %v983
      %v1112 = vpop.f32.mrb[0].mxu0
      %v1113 = vadd.f32 0.0, %v1112
      %v1114 = vpop.f32.mrb[0].mxu0
      %1115 = vmatprep.mubr.f32.mxu0 0.0
      %1116 = vmatmul.mubr.f32.gmra.mrb[0].mxu0 %v988
      %v1117 = vpop.f32.mrb[0].mxu0
      %v1118 = vadd.f32 0.0, %v1117
      %v1119 = vpop.f32.mrb[0].mxu0
      %1120 = vmatprep.mubr.f32.mxu0 0.0
      %1121 = vmatmul.mubr.f32.gmra.mrb[0].mxu0 %v993
      %v1122 = vpop.f32.mrb[0].mxu0
      %v1123 = vadd.f32 0.0, %v1122
      %v1124 = vpop.f32.mrb[0].mxu0
      %1125 = vmatprep.mubr.f32.mxu0 0.0
      %1126 = vmatmul.mubr.f32.gmra.mrb[0].mxu0 %v998
      %v1127 = vpop.f32.mrb[0].mxu0
      %v1128 = vadd.f32 0.0, %v1127
      %v1129 = vpop.f32.mrb[0].mxu0
      %1130 = vmatprep.mubr.f32.mxu0 0.0
      %1131 = vmatmul.mubr.f32.gmra.mrb[0].mxu0 %v1003
      %v1132 = vpop.f32.mrb[0].mxu0
      %v1133 = vadd.f32 0.0, %v1132
      %v1134 = vpop.f32.mrb[0].mxu0
      %1135 = vmatprep.mubr.f32.mxu0 0.0
      %1136 = vmatmul.mubr.f32.gmra.mrb[0].mxu0 %v1008
      %v1137 = vpop.f32.mrb[0].mxu0
      %v1138 = vadd.f32 0.0, %v1137
      %v1139 = vpop.f32.mrb[0].mxu0
      %1140 = vmatprep.mubr.f32.mxu0 0.0
      %1141 = vmatmul.mubr.f32.gmra.mrb[0].mxu0 %v1013
      %v1142 = vpop.f32.mrb[0].mxu0
      %v1143 = vadd.f32 0.0, %v1142
      %v1144 = vpop.f32.mrb[0].mxu0
      %1145 = vmatprep.mubr.f32.mxu0 0.0
      %1146 = vmatmul.mubr.f32.gmra.mrb[0].mxu0 %v1018
      %v1147 = vpop.f32.mrb[0].mxu0
      %v1148 = vadd.f32 0.0, %v1147
      %v1149 = vpop.f32.mrb[0].mxu0
      %1150 = vmatprep.mubr.f32.mxu0 0.0
      %1151 = vmatmul.mubr.f32.gmra.mrb[0].mxu0 %v1023
      %v1152 = vpop.f32.mrb[0].mxu0
      %v1153 = vadd.f32 0.0, %v1152
      %v1154 = vpop.f32.mrb[0].mxu0
      %1155 = vmatprep.mubr.f32.mxu0 0.0
      %1156 = vmatmul.mubr.f32.gmra.mrb[0].mxu0 %v1028
      %v1157 = vpop.f32.mrb[0].mxu0
      %v1158 = vadd.f32 0.0, %v1157
      %v1159 = vpop.f32.mrb[0].mxu0
      %1160 = vmatprep.mubr.f32.mxu0 0.0
      %1161 = vmatmul.mubr.f32.gmra.mrb[0].mxu0 %v1033
      %v1162 = vpop.f32.mrb[0].mxu0
      %v1163 = vadd.f32 0.0, %v1162
      %v1164 = vpop.f32.mrb[0].mxu0
      %1165 = vmatprep.mubr.f32.mxu0 0.0
      %1166 = vmatmul.mubr.f32.gmra.mrb[0].mxu0 %v1038
      %v1167 = vpop.f32.mrb[0].mxu0
      %v1168 = vadd.f32 0.0, %v1167
      %v1169 = vpop.f32.mrb[0].mxu0
      %1170 = vdwg.mxu0
      %1171 = vmatprep.subr.mxu0 0.0
      %1172 = vmatpush1.xpose.msra.mxu0 %v978
      %1173 = vmatprep.subr.mxu0 0.0
      %1174 = vmatpush1.xpose.msra.mxu0 %v983
      %1175 = vmatprep.subr.mxu0 0.0
      %1176 = vmatpush1.xpose.msra.mxu0 %v988
      %1177 = vmatprep.subr.mxu0 0.0
      %1178 = vmatpush1.xpose.msra.mxu0 %v993
      %1179 = vmatprep.subr.mxu0 0.0
      %1180 = vmatpush1.xpose.msra.mxu0 %v998
      %1181 = vmatprep.subr.mxu0 0.0
      %1182 = vmatpush1.xpose.msra.mxu0 %v1003
      %1183 = vmatprep.subr.mxu0 0.0
      %1184 = vmatpush1.xpose.msra.mxu0 %v1008
      %1185 = vmatprep.subr.mxu0 0.0
      %1186 = vmatpush1.xpose.msra.mxu0 %v1013
      %1187 = vmatprep.subr.mxu0 0.0
      %1188 = vmatpush1.xpose.msra.mxu0 %v1018
      %1189 = vmatprep.subr.mxu0 0.0
      %1190 = vmatpush1.xpose.msra.mxu0 %v1023
      %1191 = vmatprep.subr.mxu0 0.0
      %1192 = vmatpush1.xpose.msra.mxu0 %v1028
      %1193 = vmatprep.subr.mxu0 0.0
      %1194 = vmatpush1.xpose.msra.mxu0 %v1033
      %1195 = vmatprep.subr.mxu0 0.0
      %1196 = vmatpush1.xpose.msra.mxu0 %v1038
      %1197 = vmatprep.subr.mxu0 0.0
      %1198 = vmatpush1.xpose.msra.mxu0 0.0
      %1199 = vmatprep.subr.mxu0 0.0
      %1200 = vmatpush1.xpose.msra.mxu0 0.0
      %1201 = vmatprep.subr.mxu0 0.0
      %1202 = vmatpush1.xpose.msra.mxu0 0.0
      %1203 = vmatprep.subr.mxu0 0.0
      %1204 = vmatpush1.xpose.msra.mxu0 0.0
      %1205 = vmatprep.subr.mxu0 0.0
      %1206 = vmatpush1.xpose.msra.mxu0 0.0
      %1207 = vmatprep.subr.mxu0 0.0
      %1208 = vmatpush1.xpose.msra.mxu0 0.0
      %1209 = vmatprep.subr.mxu0 0.0
      %1210 = vmatpush1.xpose.msra.mxu0 0.0
      %1211 = vmatprep.subr.mxu0 0.0
      %1212 = vmatpush1.xpose.msra.mxu0 0.0
      %1213 = vmatprep.subr.mxu0 0.0
      %1214 = vmatpush1.xpose.msra.mxu0 0.0
      %1215 = vmatprep.subr.mxu0 0.0
      %1216 = vmatpush1.xpose.msra.mxu0 0.0
      %1217 = vmatprep.subr.mxu0 0.0
      %1218 = vmatpush1.xpose.msra.mxu0 0.0
      %1219 = vmatprep.subr.mxu0 0.0
      %1220 = vmatpush1.xpose.msra.mxu0 0.0
      %1221 = vmatprep.subr.mxu0 0.0
      %1222 = vmatpush1.xpose.msra.mxu0 0.0
      %1223 = vmatprep.subr.mxu0 0.0
      %1224 = vmatpush1.xpose.msra.mxu0 0.0
      %1225 = vmatprep.subr.mxu0 0.0
      %1226 = vmatpush1.xpose.msra.mxu0 0.0
      %1227 = vmatprep.subr.mxu0 0.0
      %1228 = vmatpush1.xpose.msra.mxu0 0.0
      %1229 = vmatprep.subr.mxu0 0.0
      %1230 = vmatpush1.xpose.msra.mxu0 0.0
      %1231 = vmatprep.subr.mxu0 0.0
      %1232 = vmatpush1.xpose.msra.mxu0 0.0
      %1233 = vmatprep.subr.mxu0 0.0
      %1234 = vmatpush1.xpose.msra.mxu0 0.0
      %1235 = vmatprep.mubr.f32.mxu0 0.0
      %1236 = vmatmul.mubr.f32.gmra.mrb[0].mxu0 %v1108
      %v1237 = vpop.f32.mrb[0].mxu0
      %v1238 = vadd.f32 0.0, %v1237
      %v1239 = vpop.f32.mrb[0].mxu0
      %1240 = vmatprep.mubr.f32.mxu0 0.0
      %1241 = vmatmul.mubr.f32.gmra.mrb[0].mxu0 %v1113
      %v1242 = vpop.f32.mrb[0].mxu0
      %v1243 = vadd.f32 0.0, %v1242
      %v1244 = vpop.f32.mrb[0].mxu0
      %1245 = vmatprep.mubr.f32.mxu0 0.0
      %1246 = vmatmul.mubr.f32.gmra.mrb[0].mxu0 %v1118
      %v1247 = vpop.f32.mrb[0].mxu0
      %v1248 = vadd.f32 0.0, %v1247
      %v1249 = vpop.f32.mrb[0].mxu0
      %1250 = vmatprep.mubr.f32.mxu0 0.0
      %1251 = vmatmul.mubr.f32.gmra.mrb[0].mxu0 %v1123
      %v1252 = vpop.f32.mrb[0].mxu0
      %v1253 = vadd.f32 0.0, %v1252
      %v1254 = vpop.f32.mrb[0].mxu0
      %1255 = vmatprep.mubr.f32.mxu0 0.0
      %1256 = vmatmul.mubr.f32.gmra.mrb[0].mxu0 %v1128
      %v1257 = vpop.f32.mrb[0].mxu0
      %v1258 = vadd.f32 0.0, %v1257
      %v1259 = vpop.f32.mrb[0].mxu0
      %1260 = vmatprep.mubr.f32.mxu0 0.0
      %1261 = vmatmul.mubr.f32.gmra.mrb[0].mxu0 %v1133
      %v1262 = vpop.f32.mrb[0].mxu0
      %v1263 = vadd.f32 0.0, %v1262
      %v1264 = vpop.f32.mrb[0].mxu0
      %1265 = vmatprep.mubr.f32.mxu0 0.0
      %1266 = vmatmul.mubr.f32.gmra.mrb[0].mxu0 %v1138
      %v1267 = vpop.f32.mrb[0].mxu0
      %v1268 = vadd.f32 0.0, %v1267
      %v1269 = vpop.f32.mrb[0].mxu0
      %1270 = vmatprep.mubr.f32.mxu0 0.0
      %1271 = vmatmul.mubr.f32.gmra.mrb[0].mxu0 %v1143
      %v1272 = vpop.f32.mrb[0].mxu0
      %v1273 = vadd.f32 0.0, %v1272
      %v1274 = vpop.f32.mrb[0].mxu0
      %1275 = vmatprep.mubr.f32.mxu0 0.0
      %1276 = vmatmul.mubr.f32.gmra.mrb[0].mxu0 %v1148
      %v1277 = vpop.f32.mrb[0].mxu0
      %v1278 = vadd.f32 0.0, %v1277
      %v1279 = vpop.f32.mrb[0].mxu0
      %1280 = vmatprep.mubr.f32.mxu0 0.0
      %1281 = vmatmul.mubr.f32.gmra.mrb[0].mxu0 %v1153
      %v1282 = vpop.f32.mrb[0].mxu0
      %v1283 = vadd.f32 0.0, %v1282
      %v1284 = vpop.f32.mrb[0].mxu0
      %1285 = vmatprep.mubr.f32.mxu0 0.0
      %1286 = vmatmul.mubr.f32.gmra.mrb[0].mxu0 %v1158
      %v1287 = vpop.f32.mrb[0].mxu0
      %v1288 = vadd.f32 0.0, %v1287
      %v1289 = vpop.f32.mrb[0].mxu0
      %1290 = vmatprep.mubr.f32.mxu0 0.0
      %1291 = vmatmul.mubr.f32.gmra.mrb[0].mxu0 %v1163
      %v1292 = vpop.f32.mrb[0].mxu0
      %v1293 = vadd.f32 0.0, %v1292
      %v1294 = vpop.f32.mrb[0].mxu0
      %1295 = vmatprep.mubr.f32.mxu0 0.0
      %1296 = vmatmul.mubr.f32.gmra.mrb[0].mxu0 %v1168
      %v1297 = vpop.f32.mrb[0].mxu0
      %v1298 = vadd.f32 0.0, %v1297
      %v1299 = vpop.f32.mrb[0].mxu0
      %1300 = vdwg.mxu0
      %v1301 = vsel %vm742, %v1238, -inf
      %1302 = vmax.xlane.f32.xlu0 %v1301
      %v1303 = vpop.xlane.xlu0 %1302
      %v1304 = vsel %vm742, %v1243, -inf
      %1305 = vmax.xlane.f32.xlu0 %v1304
      %v1306 = vpop.xlane.xlu0 %1305
      %v1307 = vsel %vm742, %v1248, -inf
      %1308 = vmax.xlane.f32.xlu0 %v1307
      %v1309 = vpop.xlane.xlu0 %1308
      %v1310 = vsel %vm742, %v1253, -inf
      %1311 = vmax.xlane.f32.xlu0 %v1310
      %v1312 = vpop.xlane.xlu0 %1311
      %v1313 = vsel %vm742, %v1258, -inf
      %1314 = vmax.xlane.f32.xlu0 %v1313
      %v1315 = vpop.xlane.xlu0 %1314
      %v1316 = vsel %vm742, %v1263, -inf
      %1317 = vmax.xlane.f32.xlu0 %v1316
      %v1318 = vpop.xlane.xlu0 %1317
      %v1319 = vsel %vm742, %v1268, -inf
      %1320 = vmax.xlane.f32.xlu0 %v1319
      %v1321 = vpop.xlane.xlu0 %1320
      %v1322 = vsel %vm742, %v1273, -inf
      %1323 = vmax.xlane.f32.xlu0 %v1322
      %v1324 = vpop.xlane.xlu0 %1323
      %v1325 = vsel %vm742, %v1278, -inf
      %1326 = vmax.xlane.f32.xlu0 %v1325
      %v1327 = vpop.xlane.xlu0 %1326
      %v1328 = vsel %vm742, %v1283, -inf
      %1329 = vmax.xlane.f32.xlu0 %v1328
      %v1330 = vpop.xlane.xlu0 %1329
      %v1331 = vsel %vm742, %v1288, -inf
      %1332 = vmax.xlane.f32.xlu0 %v1331
      %v1333 = vpop.xlane.xlu0 %1332
      %v1334 = vsel %vm742, %v1293, -inf
      %1335 = vmax.xlane.f32.xlu0 %v1334
      %v1336 = vpop.xlane.xlu0 %1335
      %v1337 = vsel %vm779, %v1298, -inf
      %1338 = vmax.xlane.f32.xlu0 %v1337
      %v1339 = vpop.xlane.xlu0 %1338
      %v1340 = vsub.f32 %v1238, %v1303
      %v1341 = vsub.f32 %v1243, %v1306
      %v1342 = vsub.f32 %v1248, %v1309
      %v1343 = vsub.f32 %v1253, %v1312
      %v1344 = vsub.f32 %v1258, %v1315
      %v1345 = vsub.f32 %v1263, %v1318
      %v1346 = vsub.f32 %v1268, %v1321
      %v1347 = vsub.f32 %v1273, %v1324
      %v1348 = vsub.f32 %v1278, %v1327
      %v1349 = vsub.f32 %v1283, %v1330
      %v1350 = vsub.f32 %v1288, %v1333
      %v1351 = vsub.f32 %v1293, %v1336
      %v1352 = vsub.f32 %v1298, %v1339
      %v1353 = vmul.f32 %v1340, 1.442695
      %v1354 = vpow.pop %v1353
      %v1355 = vmul.f32 %v1341, 1.442695
      %v1356 = vpow.pop %v1355
      %v1357 = vmul.f32 %v1342, 1.442695
      %v1358 = vpow.pop %v1357
      %v1359 = vmul.f32 %v1343, 1.442695
      %v1360 = vpow.pop %v1359
      %v1361 = vmul.f32 %v1344, 1.442695
      %v1362 = vpow.pop %v1361
      %v1363 = vmul.f32 %v1345, 1.442695
      %v1364 = vpow.pop %v1363
      %v1365 = vmul.f32 %v1346, 1.442695
      %v1366 = vpow.pop %v1365
      %v1367 = vmul.f32 %v1347, 1.442695
      %v1368 = vpow.pop %v1367
      %v1369 = vmul.f32 %v1348, 1.442695
      %v1370 = vpow.pop %v1369
      %v1371 = vmul.f32 %v1349, 1.442695
      %v1372 = vpow.pop %v1371
      %v1373 = vmul.f32 %v1350, 1.442695
      %v1374 = vpow.pop %v1373
      %v1375 = vmul.f32 %v1351, 1.442695
      %v1376 = vpow.pop %v1375
      %v1377 = vmul.f32 %v1352, 1.442695
      %v1378 = vpow.pop %v1377
      %v1379 = vsel %vm742, %v1354, 0.0
      %1380 = vadd.xlane.f32.xlu0 %v1379
      %v1381 = vpop.xlane.xlu0 %1380
      %v1382 = vsel %vm742, %v1356, 0.0
      %1383 = vadd.xlane.f32.xlu0 %v1382
      %v1384 = vpop.xlane.xlu0 %1383
      %v1385 = vsel %vm742, %v1358, 0.0
      %1386 = vadd.xlane.f32.xlu0 %v1385
      %v1387 = vpop.xlane.xlu0 %1386
      %v1388 = vsel %vm742, %v1360, 0.0
      %1389 = vadd.xlane.f32.xlu0 %v1388
      %v1390 = vpop.xlane.xlu0 %1389
      %v1391 = vsel %vm742, %v1362, 0.0
      %1392 = vadd.xlane.f32.xlu0 %v1391
      %v1393 = vpop.xlane.xlu0 %1392
      %v1394 = vsel %vm742, %v1364, 0.0
      %1395 = vadd.xlane.f32.xlu0 %v1394
      %v1396 = vpop.xlane.xlu0 %1395
      %v1397 = vsel %vm742, %v1366, 0.0
      %1398 = vadd.xlane.f32.xlu0 %v1397
      %v1399 = vpop.xlane.xlu0 %1398
      %v1400 = vsel %vm742, %v1368, 0.0
      %1401 = vadd.xlane.f32.xlu0 %v1400
      %v1402 = vpop.xlane.xlu0 %1401
      %v1403 = vsel %vm742, %v1370, 0.0
      %1404 = vadd.xlane.f32.xlu0 %v1403
      %v1405 = vpop.xlane.xlu0 %1404
      %v1406 = vsel %vm742, %v1372, 0.0
      %1407 = vadd.xlane.f32.xlu0 %v1406
      %v1408 = vpop.xlane.xlu0 %1407
      %v1409 = vsel %vm742, %v1374, 0.0
      %1410 = vadd.xlane.f32.xlu0 %v1409
      %v1411 = vpop.xlane.xlu0 %1410
      %v1412 = vsel %vm742, %v1376, 0.0
      %1413 = vadd.xlane.f32.xlu0 %v1412
      %v1414 = vpop.xlane.xlu0 %1413
      %v1415 = vsel %vm779, %v1378, 0.0
      %1416 = vadd.xlane.f32.xlu0 %v1415
      %v1417 = vpop.xlane.xlu0 %1416
      %v1418 = vrcp.pop %v1381
      %v1419 = vrcp.pop %v1384
      %v1420 = vrcp.pop %v1387
      %v1421 = vrcp.pop %v1390
      %v1422 = vrcp.pop %v1393
      %v1423 = vrcp.pop %v1396
      %v1424 = vrcp.pop %v1399
      %v1425 = vrcp.pop %v1402
      %v1426 = vrcp.pop %v1405
      %v1427 = vrcp.pop %v1408
      %v1428 = vrcp.pop %v1411
      %v1429 = vrcp.pop %v1414
      %v1430 = vrcp.pop %v1417
      %v1431 = vmul.f32 %v1354, %v1418
      %v1432 = vmul.f32 %v1356, %v1419
      %v1433 = vmul.f32 %v1358, %v1420
      %v1434 = vmul.f32 %v1360, %v1421
      %v1435 = vmul.f32 %v1362, %v1422
      %v1436 = vmul.f32 %v1364, %v1423
      %v1437 = vmul.f32 %v1366, %v1424
      %v1438 = vmul.f32 %v1368, %v1425
      %v1439 = vmul.f32 %v1370, %v1426
      %v1440 = vmul.f32 %v1372, %v1427
      %v1441 = vmul.f32 %v1374, %v1428
      %v1442 = vmul.f32 %v1376, %v1429
      %v1443 = vmul.f32 %v1378, %v1430
      %v1444 = vadd.f32 %v887, %v1431
      %v1445 = vadd.f32 %v888, %v1432
      %v1446 = vadd.f32 %v889, %v1433
      %v1447 = vadd.f32 %v890, %v1434
      %v1448 = vadd.f32 %v891, %v1435
      %v1449 = vadd.f32 %v892, %v1436
      %v1450 = vadd.f32 %v893, %v1437
      %v1451 = vadd.f32 %v894, %v1438
      %v1452 = vadd.f32 %v895, %v1439
      %v1453 = vadd.f32 %v896, %v1440
      %v1454 = vadd.f32 %v897, %v1441
      %v1455 = vadd.f32 %v898, %v1442
      %v1456 = vadd.f32 %v899, %v1443
      %v1458 = vsel %vm742, %v1444, 0
      %v1461 = vsel %vm742, %v1445, 0
      %v1464 = vsel %vm742, %v1446, 0
      %v1467 = vsel %vm742, %v1447, 0
      %v1470 = vsel %vm742, %v1448, 0
      %v1473 = vsel %vm742, %v1449, 0
      %v1476 = vsel %vm742, %v1450, 0
      %v1479 = vsel %vm742, %v1451, 0
      %v1482 = vsel %vm742, %v1452, 0
      %v1485 = vsel %vm742, %v1453, 0
      %v1488 = vsel %vm742, %v1454, 0
      %v1491 = vsel %vm742, %v1455, 0
      %v1494 = vsel %vm742, %v1456, 0
      %vm1496 = vcmask 1043456
      %v1497 = vsel %vm1496, %v284, 0
      %1499 = vmatprep.subr.mxu0 0.0
      %1500 = vmatpush1.msra.mxu0 %v272
      %1501 = vmatprep.subr.mxu0 0.0
      %1502 = vmatpush1.msra.mxu0 %v273
      %1503 = vmatprep.subr.mxu0 0.0
      %1504 = vmatpush1.msra.mxu0 %v274
      %1505 = vmatprep.subr.mxu0 0.0
      %1506 = vmatpush1.msra.mxu0 %v275
      %1507 = vmatprep.subr.mxu0 0.0
      %1508 = vmatpush1.msra.mxu0 %v276
      %1509 = vmatprep.subr.mxu0 0.0
      %1510 = vmatpush1.msra.mxu0 %v277
      %1511 = vmatprep.subr.mxu0 0.0
      %1512 = vmatpush1.msra.mxu0 %v278
      %1513 = vmatprep.subr.mxu0 0.0
      %1514 = vmatpush1.msra.mxu0 %v279
      %1515 = vmatprep.subr.mxu0 0.0
      %1516 = vmatpush1.msra.mxu0 %v280
      %1517 = vmatprep.subr.mxu0 0.0
      %1518 = vmatpush1.msra.mxu0 %v281
      %1519 = vmatprep.subr.mxu0 0.0
      %1520 = vmatpush1.msra.mxu0 %v282
      %1521 = vmatprep.subr.mxu0 0.0
      %1522 = vmatpush1.msra.mxu0 %v283
      %1523 = vmatprep.subr.mxu0 0.0
      %1524 = vmatpush1.msra.mxu0 %v1497
      %1525 = vmatprep.subr.mxu0 0.0
      %1526 = vmatpush1.msra.mxu0 0.0
      %1527 = vmatprep.subr.mxu0 0.0
      %1528 = vmatpush1.msra.mxu0 0.0
      %1529 = vmatprep.subr.mxu0 0.0
      %1530 = vmatpush1.msra.mxu0 0.0
      %1531 = vmatprep.subr.mxu0 0.0
      %1532 = vmatpush1.msra.mxu0 0.0
      %1533 = vmatprep.subr.mxu0 0.0
      %1534 = vmatpush1.msra.mxu0 0.0
      %1535 = vmatprep.subr.mxu0 0.0
      %1536 = vmatpush1.msra.mxu0 0.0
      %1537 = vmatprep.subr.mxu0 0.0
      %1538 = vmatpush1.msra.mxu0 0.0
      %1539 = vmatprep.subr.mxu0 0.0
      %1540 = vmatpush1.msra.mxu0 0.0
      %1541 = vmatprep.subr.mxu0 0.0
      %1542 = vmatpush1.msra.mxu0 0.0
      %1543 = vmatprep.subr.mxu0 0.0
      %1544 = vmatpush1.msra.mxu0 0.0
      %1545 = vmatprep.subr.mxu0 0.0
      %1546 = vmatpush1.msra.mxu0 0.0
      %1547 = vmatprep.subr.mxu0 0.0
      %1548 = vmatpush1.msra.mxu0 0.0
      %1549 = vmatprep.subr.mxu0 0.0
      %1550 = vmatpush1.msra.mxu0 0.0
      %1551 = vmatprep.subr.mxu0 0.0
      %1552 = vmatpush1.msra.mxu0 0.0
      %1553 = vmatprep.subr.mxu0 0.0
      %1554 = vmatpush1.msra.mxu0 0.0
      %1555 = vmatprep.subr.mxu0 0.0
      %1556 = vmatpush1.msra.mxu0 0.0
      %1557 = vmatprep.subr.mxu0 0.0
      %1558 = vmatpush1.msra.mxu0 0.0
      %1559 = vmatprep.subr.mxu0 0.0
      %1560 = vmatpush1.msra.mxu0 0.0
      %1561 = vmatprep.subr.mxu0 0.0
      %1562 = vmatpush1.msra.mxu0 0.0
      %1563 = vmatprep.mubr.f32.mxu0 0.0
      %1564 = vmatmul.mubr.f32.gmra.mrb[0].mxu0 %v1458
      %v1565 = vpop.f32.mrb[0].mxu0
      %v1566 = vadd.f32 0.0, %v1565
      %v1567 = vpop.f32.mrb[0].mxu0
      %1568 = vmatprep.mubr.f32.mxu0 0.0
      %1569 = vmatmul.mubr.f32.gmra.mrb[0].mxu0 %v1461
      %v1570 = vpop.f32.mrb[0].mxu0
      %v1571 = vadd.f32 0.0, %v1570
      %v1572 = vpop.f32.mrb[0].mxu0
      %1573 = vmatprep.mubr.f32.mxu0 0.0
      %1574 = vmatmul.mubr.f32.gmra.mrb[0].mxu0 %v1464
      %v1575 = vpop.f32.mrb[0].mxu0
      %v1576 = vadd.f32 0.0, %v1575
      %v1577 = vpop.f32.mrb[0].mxu0
      %1578 = vmatprep.mubr.f32.mxu0 0.0
      %1579 = vmatmul.mubr.f32.gmra.mrb[0].mxu0 %v1467
      %v1580 = vpop.f32.mrb[0].mxu0
      %v1581 = vadd.f32 0.0, %v1580
      %v1582 = vpop.f32.mrb[0].mxu0
      %1583 = vmatprep.mubr.f32.mxu0 0.0
      %1584 = vmatmul.mubr.f32.gmra.mrb[0].mxu0 %v1470
      %v1585 = vpop.f32.mrb[0].mxu0
      %v1586 = vadd.f32 0.0, %v1585
      %v1587 = vpop.f32.mrb[0].mxu0
      %1588 = vmatprep.mubr.f32.mxu0 0.0
      %1589 = vmatmul.mubr.f32.gmra.mrb[0].mxu0 %v1473
      %v1590 = vpop.f32.mrb[0].mxu0
      %v1591 = vadd.f32 0.0, %v1590
      %v1592 = vpop.f32.mrb[0].mxu0
      %1593 = vmatprep.mubr.f32.mxu0 0.0
      %1594 = vmatmul.mubr.f32.gmra.mrb[0].mxu0 %v1476
      %v1595 = vpop.f32.mrb[0].mxu0
      %v1596 = vadd.f32 0.0, %v1595
      %v1597 = vpop.f32.mrb[0].mxu0
      %1598 = vmatprep.mubr.f32.mxu0 0.0
      %1599 = vmatmul.mubr.f32.gmra.mrb[0].mxu0 %v1479
      %v1600 = vpop.f32.mrb[0].mxu0
      %v1601 = vadd.f32 0.0, %v1600
      %v1602 = vpop.f32.mrb[0].mxu0
      %1603 = vmatprep.mubr.f32.mxu0 0.0
      %1604 = vmatmul.mubr.f32.gmra.mrb[0].mxu0 %v1482
      %v1605 = vpop.f32.mrb[0].mxu0
      %v1606 = vadd.f32 0.0, %v1605
      %v1607 = vpop.f32.mrb[0].mxu0
      %1608 = vmatprep.mubr.f32.mxu0 0.0
      %1609 = vmatmul.mubr.f32.gmra.mrb[0].mxu0 %v1485
      %v1610 = vpop.f32.mrb[0].mxu0
      %v1611 = vadd.f32 0.0, %v1610
      %v1612 = vpop.f32.mrb[0].mxu0
      %1613 = vmatprep.mubr.f32.mxu0 0.0
      %1614 = vmatmul.mubr.f32.gmra.mrb[0].mxu0 %v1488
      %v1615 = vpop.f32.mrb[0].mxu0
      %v1616 = vadd.f32 0.0, %v1615
      %v1617 = vpop.f32.mrb[0].mxu0
      %1618 = vmatprep.mubr.f32.mxu0 0.0
      %1619 = vmatmul.mubr.f32.gmra.mrb[0].mxu0 %v1491
      %v1620 = vpop.f32.mrb[0].mxu0
      %v1621 = vadd.f32 0.0, %v1620
      %v1622 = vpop.f32.mrb[0].mxu0
      %1623 = vmatprep.mubr.f32.mxu0 0.0
      %1624 = vmatmul.mubr.f32.gmra.mrb[0].mxu0 %v1494
      %v1625 = vpop.f32.mrb[0].mxu0
      %v1626 = vadd.f32 0.0, %v1625
      %v1627 = vpop.f32.mrb[0].mxu0
      %1628 = vdwg.mxu0
      %v1629 = vmul.f32 %v1566, 0.5
      %v1630 = vmul.f32 %v1571, 0.5
      %v1631 = vmul.f32 %v1576, 0.5
      %v1632 = vmul.f32 %v1581, 0.5
      %v1633 = vmul.f32 %v1586, 0.5
      %v1634 = vmul.f32 %v1591, 0.5
      %v1635 = vmul.f32 %v1596, 0.5
      %v1636 = vmul.f32 %v1601, 0.5
      %v1637 = vmul.f32 %v1606, 0.5
      %v1638 = vmul.f32 %v1611, 0.5
      %v1639 = vmul.f32 %v1616, 0.5
      %v1640 = vmul.f32 %v1621, 0.5
      %v1641 = vmul.f32 %v1626, 0.5
      %v1642 = vld [vmem:[%s4] sm:$0xff]
      %v1643 = vld [vmem:[%s4 + $0x8] sm:$0xff]
      %v1644 = vld [vmem:[%s4 + $0x10] sm:$0xff]
      %v1645 = vld [vmem:[%s4 + $0x18] sm:$0xff]
      %v1646 = vld [vmem:[%s5] sm:$0x1]
      %v1648 = vlaneseq
      %v1649 = vshrl.u32 %v1648, 7
      %v1650 = vsub.s32 0, %v1649
      %v1651 = vrot.slane %v1646, %v1650
      %v1654 = vsel %vm312, %v1629, 0
      %v1657 = vsel %vm312, %v1630, 0
      %v1660 = vsel %vm312, %v1631, 0
      %v1663 = vsel %vm312, %v1632, 0
      %v1666 = vsel %vm312, %v1633, 0
      %v1669 = vsel %vm312, %v1634, 0
      %v1672 = vsel %vm312, %v1635, 0
      %v1675 = vsel %vm312, %v1636, 0
      %v1678 = vsel %vm312, %v1637, 0
      %v1681 = vsel %vm312, %v1638, 0
      %v1684 = vsel %vm312, %v1639, 0
      %v1687 = vsel %vm312, %v1640, 0
      %v1690 = vsel %vm312, %v1641, 0
      %1692 = vmatprep.subr.mxu0 0.0
      %1693 = vmatpush1.msra.mxu0 %v1642
      %1694 = vmatprep.subr.mxu0 0.0
      %1695 = vmatpush1.msra.mxu0 %v1643
      %1696 = vmatprep.subr.mxu0 0.0
      %1697 = vmatpush1.msra.mxu0 %v1644
      %1698 = vmatprep.subr.mxu0 0.0
      %1699 = vmatpush1.msra.mxu0 %v1645
      %1700 = vmatprep.subr.mxu0 0.0
      %1701 = vmatpush1.msra.mxu0 0.0
      %1702 = vmatprep.subr.mxu0 0.0
      %1703 = vmatpush1.msra.mxu0 0.0
      %1704 = vmatprep.subr.mxu0 0.0
      %1705 = vmatpush1.msra.mxu0 0.0
      %1706 = vmatprep.subr.mxu0 0.0
      %1707 = vmatpush1.msra.mxu0 0.0
      %1708 = vmatprep.subr.mxu0 0.0
      %1709 = vmatpush1.msra.mxu0 0.0
      %1710 = vmatprep.subr.mxu0 0.0
      %1711 = vmatpush1.msra.mxu0 0.0
      %1712 = vmatprep.subr.mxu0 0.0
      %1713 = vmatpush1.msra.mxu0 0.0
      %1714 = vmatprep.subr.mxu0 0.0
      %1715 = vmatpush1.msra.mxu0 0.0
      %1716 = vmatprep.subr.mxu0 0.0
      %1717 = vmatpush1.msra.mxu0 0.0
      %1718 = vmatprep.subr.mxu0 0.0
      %1719 = vmatpush1.msra.mxu0 0.0
      %1720 = vmatprep.subr.mxu0 0.0
      %1721 = vmatpush1.msra.mxu0 0.0
      %1722 = vmatprep.subr.mxu0 0.0
      %1723 = vmatpush1.msra.mxu0 0.0
      %1724 = vmatprep.subr.mxu0 0.0
      %1725 = vmatpush1.msra.mxu0 0.0
      %1726 = vmatprep.subr.mxu0 0.0
      %1727 = vmatpush1.msra.mxu0 0.0
      %1728 = vmatprep.subr.mxu0 0.0
      %1729 = vmatpush1.msra.mxu0 0.0
      %1730 = vmatprep.subr.mxu0 0.0
      %1731 = vmatpush1.msra.mxu0 0.0
      %1732 = vmatprep.subr.mxu0 0.0
      %1733 = vmatpush1.msra.mxu0 0.0
      %1734 = vmatprep.subr.mxu0 0.0
      %1735 = vmatpush1.msra.mxu0 0.0
      %1736 = vmatprep.subr.mxu0 0.0
      %1737 = vmatpush1.msra.mxu0 0.0
      %1738 = vmatprep.subr.mxu0 0.0
      %1739 = vmatpush1.msra.mxu0 0.0
      %1740 = vmatprep.subr.mxu0 0.0
      %1741 = vmatpush1.msra.mxu0 0.0
      %1742 = vmatprep.subr.mxu0 0.0
      %1743 = vmatpush1.msra.mxu0 0.0
      %1744 = vmatprep.subr.mxu0 0.0
      %1745 = vmatpush1.msra.mxu0 0.0
      %1746 = vmatprep.subr.mxu0 0.0
      %1747 = vmatpush1.msra.mxu0 0.0
      %1748 = vmatprep.subr.mxu0 0.0
      %1749 = vmatpush1.msra.mxu0 0.0
      %1750 = vmatprep.subr.mxu0 0.0
      %1751 = vmatpush1.msra.mxu0 0.0
      %1752 = vmatprep.subr.mxu0 0.0
      %1753 = vmatpush1.msra.mxu0 0.0
      %1754 = vmatprep.subr.mxu0 0.0
      %1755 = vmatpush1.msra.mxu0 0.0
      %1756 = vmatprep.mubr.f32.mxu0 0.0
      %1757 = vmatmul.mubr.f32.gmra.mrb[0].mxu0 %v1654
      %v1758 = vpop.f32.mrb[0].mxu0
      %v1759 = vadd.f32 %v1651, %v1758
      %v1760 = vpop.f32.mrb[0].mxu0
      %1761 = vmatprep.mubr.f32.mxu0 0.0
      %1762 = vmatmul.mubr.f32.gmra.mrb[0].mxu0 %v1657
      %v1763 = vpop.f32.mrb[0].mxu0
      %v1764 = vadd.f32 %v1651, %v1763
      %v1765 = vpop.f32.mrb[0].mxu0
      %1766 = vmatprep.mubr.f32.mxu0 0.0
      %1767 = vmatmul.mubr.f32.gmra.mrb[0].mxu0 %v1660
      %v1768 = vpop.f32.mrb[0].mxu0
      %v1769 = vadd.f32 %v1651, %v1768
      %v1770 = vpop.f32.mrb[0].mxu0
      %1771 = vmatprep.mubr.f32.mxu0 0.0
      %1772 = vmatmul.mubr.f32.gmra.mrb[0].mxu0 %v1663
      %v1773 = vpop.f32.mrb[0].mxu0
      %v1774 = vadd.f32 %v1651, %v1773
      %v1775 = vpop.f32.mrb[0].mxu0
      %1776 = vmatprep.mubr.f32.mxu0 0.0
      %1777 = vmatmul.mubr.f32.gmra.mrb[0].mxu0 %v1666
      %v1778 = vpop.f32.mrb[0].mxu0
      %v1779 = vadd.f32 %v1651, %v1778
      %v1780 = vpop.f32.mrb[0].mxu0
      %1781 = vmatprep.mubr.f32.mxu0 0.0
      %1782 = vmatmul.mubr.f32.gmra.mrb[0].mxu0 %v1669
      %v1783 = vpop.f32.mrb[0].mxu0
      %v1784 = vadd.f32 %v1651, %v1783
      %v1785 = vpop.f32.mrb[0].mxu0
      %1786 = vmatprep.mubr.f32.mxu0 0.0
      %1787 = vmatmul.mubr.f32.gmra.mrb[0].mxu0 %v1672
      %v1788 = vpop.f32.mrb[0].mxu0
      %v1789 = vadd.f32 %v1651, %v1788
      %v1790 = vpop.f32.mrb[0].mxu0
      %1791 = vmatprep.mubr.f32.mxu0 0.0
      %1792 = vmatmul.mubr.f32.gmra.mrb[0].mxu0 %v1675
      %v1793 = vpop.f32.mrb[0].mxu0
      %v1794 = vadd.f32 %v1651, %v1793
      %v1795 = vpop.f32.mrb[0].mxu0
      %1796 = vmatprep.mubr.f32.mxu0 0.0
      %1797 = vmatmul.mubr.f32.gmra.mrb[0].mxu0 %v1678
      %v1798 = vpop.f32.mrb[0].mxu0
      %v1799 = vadd.f32 %v1651, %v1798
      %v1800 = vpop.f32.mrb[0].mxu0
      %1801 = vmatprep.mubr.f32.mxu0 0.0
      %1802 = vmatmul.mubr.f32.gmra.mrb[0].mxu0 %v1681
      %v1803 = vpop.f32.mrb[0].mxu0
      %v1804 = vadd.f32 %v1651, %v1803
      %v1805 = vpop.f32.mrb[0].mxu0
      %1806 = vmatprep.mubr.f32.mxu0 0.0
      %1807 = vmatmul.mubr.f32.gmra.mrb[0].mxu0 %v1684
      %v1808 = vpop.f32.mrb[0].mxu0
      %v1809 = vadd.f32 %v1651, %v1808
      %v1810 = vpop.f32.mrb[0].mxu0
      %1811 = vmatprep.mubr.f32.mxu0 0.0
      %1812 = vmatmul.mubr.f32.gmra.mrb[0].mxu0 %v1687
      %v1813 = vpop.f32.mrb[0].mxu0
      %v1814 = vadd.f32 %v1651, %v1813
      %v1815 = vpop.f32.mrb[0].mxu0
      %1816 = vmatprep.mubr.f32.mxu0 0.0
      %1817 = vmatmul.mubr.f32.gmra.mrb[0].mxu0 %v1690
      %v1818 = vpop.f32.mrb[0].mxu0
      %v1819 = vadd.f32 %v1651, %v1818
      %v1820 = vpop.f32.mrb[0].mxu0
      %1821 = vdwg.mxu0
      %v1822 = vmax.f32 %v1759, 0.0
      %v1823 = vmax.f32 %v1764, 0.0
      %v1824 = vmax.f32 %v1769, 0.0
      %v1825 = vmax.f32 %v1774, 0.0
      %v1826 = vmax.f32 %v1779, 0.0
      %v1827 = vmax.f32 %v1784, 0.0
      %v1828 = vmax.f32 %v1789, 0.0
      %v1829 = vmax.f32 %v1794, 0.0
      %v1830 = vmax.f32 %v1799, 0.0
      %v1831 = vmax.f32 %v1804, 0.0
      %v1832 = vmax.f32 %v1809, 0.0
      %v1833 = vmax.f32 %v1814, 0.0
      %v1834 = vmax.f32 %v1819, 0.0
      %1835 = vst [vmem:[%s271] sm:$0xff] %v1822
      %1836 = vst [vmem:[%s271 + $0x8] sm:$0xff] %v1823
      %1837 = vst [vmem:[%s271 + $0x10] sm:$0xff] %v1824
      %1838 = vst [vmem:[%s271 + $0x18] sm:$0xff] %v1825
      %1839 = vst [vmem:[%s271 + $0x20] sm:$0xff] %v1826
      %1840 = vst [vmem:[%s271 + $0x28] sm:$0xff] %v1827
      %1841 = vst [vmem:[%s271 + $0x30] sm:$0xff] %v1828
      %1842 = vst [vmem:[%s271 + $0x38] sm:$0xff] %v1829
      %1843 = vst [vmem:[%s271 + $0x40] sm:$0xff] %v1830
      %1844 = vst [vmem:[%s271 + $0x48] sm:$0xff] %v1831
      %1845 = vst [vmem:[%s271 + $0x50] sm:$0xff] %v1832
      %1846 = vst [vmem:[%s271 + $0x58] sm:$0xff] %v1833
      %1847 = vst [vmem:[%s271 + $0x60] sm:$0xf] %v1834
      %p1848 = scmp.lt.s32.totalorder %s17, 1
      %s1849 = scalar_select %p1848, %s17, 1
      %s1850 = smul.addr %s1849, 13
      %s1851 = smul.addr %s1850, 8
      %s1852 = scalar_lea.vmem %s6, %s1851
      // Predicated region
      $region45: #{mgat_forward.1} parent=43 // pred_check
        %p1853 = pneg %p171
      $region46: #{mgat_forward.1} parent=43 // pred_check_branch
        %1855 = sbr.rel (%p1853) target = $region48
      $region47: #{mgat_forward.1} parent=43 // pred_region
        _
      $region48: #{mgat_forward.1} parent=43 // pred_fallthru
        _
    $region44: #{mgat_forward.1} parent=5 // pred_fallthru
      _
    %p1856 = scmp.le.s32.totalorder 2, %s12
    // Predicated region
    $region49: #{mgat_forward.1} parent=5 // pred_check
      %p1857 = pneg %p1856
    $region50: #{mgat_forward.1} parent=5 // pred_check_branch
      %1859 = sbr.rel (%p1857) target = $region52
    $region51: #{mgat_forward.1} parent=5 // pred_region
      %s1860 = ssub.s32 %s12, 2
      // Predicated region
      $region53: #{mgat_forward.1} parent=51 // pred_check
        %p1861 = pneg %p177
      $region54: #{mgat_forward.1} parent=51 // pred_check_branch
        %1863 = sbr.rel (%p1861) target = $region56
      $region55: #{mgat_forward.1} parent=51 // pred_region
        %p1864 = scmp.lt.s32.totalorder %s18, 1
        %s1865 = scalar_select %p1864, %s18, 1
        %s1866 = smul.addr %s1865, 13
        %s1867 = smul.addr %s1866, 8
        %s1868 = scalar_lea.vmem %s6, %s1867
      $region56: #{mgat_forward.1} parent=51 // pred_fallthru
        _
    $region52: #{mgat_forward.1} parent=5 // pred_fallthru
      _
  $region6: #{mgat_forward.1} parent=0 // loop_footer
    %s16 = sadd.s32 1, %s12
  $region7: #{mgat_forward.1} parent=0 // loop_footer_branch
    %11 = sbr.rel target = $region3
  $region8: #{mgat_forward.1} parent=0 // loop_exit
    _

</llo_original>
